<compile_context>
chip_gen: v7x
topology: tpu7x:2x2x1
jax: 0.10.0
libtpu: 0.0.40
codegen_flags: <defaults>
</compile_context>

<pallas_src>
import numpy as np
import jax
import jax.numpy as jnp
from jax.experimental import pallas as pl
from jax.experimental.pallas import tpu as pltpu

EPS = 1e-5
BF16 = jnp.bfloat16
F32 = jnp.float32


def _round_up(x, m):
    return ((x + m - 1) // m) * m


@jax.jit
def residual_block_v2(x, w1, w2, gamma1, beta1, gamma2, beta2):
    """Forward pass of ResidualBlock_v2 (stride=1, identity shortcut)."""
    N, C, H, W = x.shape
    Cp = w1.shape[0]
    assert w1.shape == (Cp, C, 3, 3) and w2.shape == (Cp, Cp, 3, 3)
    # TODO(synk): downsampling shortcut (1x1 conv + BN) for stride != 1 or
    # in_planes != planes is not implemented; the identity shortcut requires:
    assert C == Cp, "identity shortcut requires in_planes == planes"

    Hp, Wp = H + 2, W + 2
    Sp = Hp * Wp                        # flattened zero-padded spatial plane
    SpR = _round_up(Sp, 128)            # lane-rounded plane width (HBM blocks)
    EXT_HEAD = _round_up(Wp + 1, 128)   # lane-aligned head pad of the scratch
    EXT_TAIL = Wp + 1
    Sext = EXT_HEAD + SpR + EXT_TAIL    # scratch plane width
    OFF = EXT_HEAD - (Wp + 1)           # flat offset of tap (dy=0, dx=0)
    HWf = float(H * W)

    Cin = _round_up(C, 8)               # sublane-pad channels (no VPU fallback)
    Cout = _round_up(Cp, 8)
    # Cout tiling -> second "parallel" grid axis (megacore / VMEM scaling).
    TCO = 128 if (Cout > 128 and Cout % 128 == 0) else Cout
    NCO = Cout // TCO

    # ------------- wrapper-side prep: ONE bf16 pad, no transposes ------------
    x_pad = jnp.pad(x.astype(BF16),
                    ((0, 0), (0, Cin - C), (1, 1), (1, 1))).reshape(N, Cin, Sp)

    def prep_w(w, cin, cin_p, cout_p):
        wpad = jnp.pad(w.astype(F32),
                       ((0, cout_p - w.shape[0]), (0, cin_p - cin),
                        (0, 0), (0, 0)))
        # OIHW -> (Cout, 9*Cin); K ordered tap-major (dy,dx), channel-minor.
        return jnp.transpose(wpad, (0, 2, 3, 1)).reshape(
            cout_p, 9 * cin_p).astype(BF16)

    w1m = prep_w(w1, C, Cin, Cout)
    w2m = prep_w(w2, Cp, Cout, Cout)

    # interior mask over the lane-rounded flattened plane (1 inside HxW image)
    m_np = np.zeros((1, SpR), np.float32)
    plane = np.zeros((Hp, Wp), np.float32)
    plane[1:1 + H, 1:1 + W] = 1.0
    m_np[0, :Sp] = plane.reshape(-1)
    interior = jnp.asarray(m_np)                                   # (1, SpR)

    cparams = pltpu.CompilerParams(
        dimension_semantics=("parallel", "parallel"),
        vmem_limit_bytes=64 * 1024 * 1024)

    # ------------------------- in-kernel helpers -----------------------------
    def conv3x3(src, wmat):
        """3x3 conv over the extended flat plane.

        src : (cin, Sext) f32 scratch contents (head/tail strips zeroed)
        wmat: (tco, 9*cin) bf16, tap-major / channel-minor K layout
        out : (tco, SpR) f32; border / tail lanes hold junk (masked later)
        """
        cin = src.shape[0]
        taps = [src[:, OFF + dy * Wp + dx: OFF + dy * Wp + dx + SpR]
                for dy in range(3) for dx in range(3)]
        if 9 * cin <= 576:
            # small channel count: single im2col matmul, K = 9*cin
            stack = jnp.concatenate(taps, axis=0).astype(BF16)
            return jnp.dot(wmat, stack, preferred_element_type=F32)
        # large channel count: per-dy groups (K = 3*cin) -> no giant stack
        acc = jnp.zeros((wmat.shape[0], SpR), F32)
        for dy in range(3):
            grp = jnp.concatenate(taps[3 * dy: 3 * dy + 3],
                                  axis=0).astype(BF16)
            acc = acc + jnp.dot(wmat[:, 3 * dy * cin: 3 * (dy + 1) * cin], grp,
                                preferred_element_type=F32)
        return acc

    def masked_stats(acc, mask):
        """Per-channel mean and sum-of-squared-deviations over interior pixels."""
        mean = jnp.sum(acc * mask, axis=1, keepdims=True) * (1.0 / HWf)
        d = (acc - mean) * mask
        return mean, jnp.sum(d * d, axis=1, keepdims=True)

    def combine_bn(mean_n, m2_n, gamma, beta):
        """Exact batch stats from per-sample (mean, M2); returns BN scale/shift."""
        gmean = jnp.mean(mean_n, axis=0)                            # (Cout, 1)
        m2 = (jnp.sum(m2_n, axis=0)
              + HWf * jnp.sum((mean_n - gmean[None]) ** 2, axis=0))
        var = m2 / (N * HWf)                                        # biased
        g = jnp.pad(gamma.astype(F32), (0, Cout - Cp)).reshape(Cout, 1)
        b = jnp.pad(beta.astype(F32), (0, Cout - Cp)).reshape(Cout, 1)
        scale = g * jax.lax.rsqrt(var + EPS)
        shift = b - gmean * scale
        return scale, shift

    # ------------- kernel 1: conv1 + per-sample bn1 statistics ---------------
    def conv1_kernel(x_ref, w_ref, mask_ref, acc_ref, mean_ref, m2_ref,
                     xext_ref):
        # Zero only the edge strips, every step (tiny; safe on both TCs).
        xext_ref[:, :EXT_HEAD] = jnp.zeros((Cin, EXT_HEAD), F32)
        xext_ref[:, EXT_HEAD + Sp:] = jnp.zeros(
            (Cin, Sext - EXT_HEAD - Sp), F32)
        xext_ref[:, EXT_HEAD:EXT_HEAD + Sp] = x_ref[0].astype(F32)
        acc = conv3x3(xext_ref[...], w_ref[...])
        mean, m2 = masked_stats(acc, mask_ref[...])
        acc_ref[...] = acc.astype(BF16)[None]
        mean_ref[...] = mean[None]
        m2_ref[...] = m2[None]

    acc1, mean1, m21 = pl.pallas_call(
        conv1_kernel,
        grid=(N, NCO),
        in_specs=[pl.BlockSpec((1, Cin, Sp), lambda n, co: (n, 0, 0)),
                  pl.BlockSpec((TCO, 9 * Cin), lambda n, co: (co, 0)),
                  pl.BlockSpec((1, SpR), lambda n, co: (0, 0))],
        out_specs=(pl.BlockSpec((1, TCO, SpR), lambda n, co: (n, co, 0)),
                   pl.BlockSpec((1, TCO, 1), lambda n, co: (n, co, 0)),
                   pl.BlockSpec((1, TCO, 1), lambda n, co: (n, co, 0))),
        out_shape=(jax.ShapeDtypeStruct((N, Cout, SpR), BF16),
                   jax.ShapeDtypeStruct((N, Cout, 1), F32),
                   jax.ShapeDtypeStruct((N, Cout, 1), F32)),
        scratch_shapes=[pltpu.VMEM((Cin, Sext), F32)],
        compiler_params=cparams,
    )(x_pad, w1m, interior)

    a1, b1 = combine_bn(mean1, m21, gamma1, beta1)

    # ------ kernel 2: bn1 affine + relu + conv2 + per-sample bn2 stats -------
    def mid_kernel(acc1_ref, w_ref, a_ref, b_ref, mask_ref,
                   acc_ref, mean_ref, m2_ref, yext_ref):
        mask = mask_ref[...]
        y = jnp.maximum(acc1_ref[0].astype(F32) * a_ref[...] + b_ref[...],
                        0.0) * mask
        # Only the two edge strips are zeroed; the SpR-wide interior store is
        # lane-aligned (EXT_HEAD multiple of 128) and overwritten every step.
        yext_ref[:, :EXT_HEAD] = jnp.zeros((Cout, EXT_HEAD), F32)
        yext_ref[:, EXT_HEAD + SpR:] = jnp.zeros((Cout, EXT_TAIL), F32)
        yext_ref[:, EXT_HEAD:EXT_HEAD + SpR] = y
        acc = conv3x3(yext_ref[...], w_ref[...])
        mean, m2 = masked_stats(acc, mask)
        acc_ref[...] = acc.astype(BF16)[None]
        mean_ref[...] = mean[None]
        m2_ref[...] = m2[None]

    acc2, mean2, m22 = pl.pallas_call(
        mid_kernel,
        grid=(N, NCO),
        in_specs=[pl.BlockSpec((1, Cout, SpR), lambda n, co: (n, 0, 0)),
                  pl.BlockSpec((TCO, 9 * Cout), lambda n, co: (co, 0)),
                  pl.BlockSpec((Cout, 1), lambda n, co: (0, 0)),
                  pl.BlockSpec((Cout, 1), lambda n, co: (0, 0)),
                  pl.BlockSpec((1, SpR), lambda n, co: (0, 0))],
        out_specs=(pl.BlockSpec((1, TCO, SpR), lambda n, co: (n, co, 0)),
                   pl.BlockSpec((1, TCO, 1), lambda n, co: (n, co, 0)),
                   pl.BlockSpec((1, TCO, 1), lambda n, co: (n, co, 0))),
        out_shape=(jax.ShapeDtypeStruct((N, Cout, SpR), BF16),
                   jax.ShapeDtypeStruct((N, Cout, 1), F32),
                   jax.ShapeDtypeStruct((N, Cout, 1), F32)),
        scratch_shapes=[pltpu.VMEM((Cout, Sext), F32)],
        compiler_params=cparams,
    )(acc1, w2m, a1, b1, interior)

    a2, b2 = combine_bn(mean2, m22, gamma2, beta2)

    # ---------- kernel 3: bn2 affine + identity shortcut + relu --------------
    def out_kernel(acc2_ref, x_ref, a_ref, b_ref, o_ref):
        z = acc2_ref[0].astype(F32) * a_ref[...] + b_ref[...]      # (TCO, SpR)
        shortcut = x_ref[0].astype(F32)                            # (TCO, Sp)
        o_ref[...] = jnp.maximum(z[:, :Sp] + shortcut, 0.0)[None]

    out_plane = pl.pallas_call(
        out_kernel,
        grid=(N, NCO),
        in_specs=[pl.BlockSpec((1, TCO, SpR), lambda n, co: (n, co, 0)),
                  pl.BlockSpec((1, TCO, Sp), lambda n, co: (n, co, 0)),
                  pl.BlockSpec((TCO, 1), lambda n, co: (co, 0)),
                  pl.BlockSpec((TCO, 1), lambda n, co: (co, 0))],
        out_specs=pl.BlockSpec((1, TCO, Sp), lambda n, co: (n, co, 0)),
        out_shape=jax.ShapeDtypeStruct((N, Cout, Sp), F32),
        compiler_params=cparams,
    )(acc2, x_pad, a2, b2)

    # drop the 1-pixel border and the channel padding (cheap XLA slice)
    return out_plane.reshape(N, Cout, Hp, Wp)[:, :Cp, 1:1 + H, 1:1 + W]


# ---------------- pure-JAX reference (validation only) ----------------------
def ref_forward(x, w1, w2, g1, b1, g2, b2):
    def conv(a, w):
        return jax.lax.conv_general_dilated(
            a, w, window_strides=(1, 1), padding=((1, 1), (1, 1)),
            dimension_numbers=("NCHW", "OIHW", "NCHW"))

    def bn(a, g, b):
        mean = jnp.mean(a, axis=(0, 2, 3), keepdims=True)
        var = jnp.mean((a - mean) ** 2, axis=(0, 2, 3), keepdims=True)
        return ((a - mean) * jax.lax.rsqrt(var + EPS)
                * g.reshape(1, -1, 1, 1) + b.reshape(1, -1, 1, 1))

    out = jax.nn.relu(bn(conv(x, w1), g1, b1))
    out = bn(conv(out, w2), g2, b2)
    return jax.nn.relu(out + x)


if __name__ == "__main__":
    N, C, H, W = 2, 4, 16, 16
    planes = 4

    key = jax.random.PRNGKey(0)
    kx, k1, k2, kg1, kb1, kg2, kb2 = jax.random.split(key, 7)

    x = jax.random.normal(kx, (N, C, H, W), jnp.float32)
    w1 = jax.random.normal(k1, (planes, C, 3, 3), jnp.float32) * 0.1
    w2 = jax.random.normal(k2, (planes, planes, 3, 3), jnp.float32) * 0.1
    g1 = 1.0 + 0.1 * jax.random.normal(kg1, (planes,), jnp.float32)
    b1 = 0.1 * jax.random.normal(kb1, (planes,), jnp.float32)
    g2 = 1.0 + 0.1 * jax.random.normal(kg2, (planes,), jnp.float32)
    b2 = 0.1 * jax.random.normal(kb2, (planes,), jnp.float32)

    out = jax.block_until_ready(residual_block_v2(x, w1, w2, g1, b1, g2, b2))
    ref = jax.block_until_ready(ref_forward(x, w1, w2, g1, b1, g2, b2))

    assert out.shape == (N, planes, H, W)
    # bf16 intermediates / bf16 MXU operands (per the perf review) -> looser
    # tolerance than the pure-f32 path; an indexing/offset bug would be O(1).
    np.testing.assert_allclose(np.asarray(out), np.asarray(ref),
                               atol=3e-2, rtol=3e-2)
    print("KERNEL_OK")
</pallas_src>

<mosaic_0001>
module attributes {stable_mosaic.version = 11 : i64} {
  func.func @conv1_kernel(%arg0: i32, %arg1: i32, %arg2: memref<1x8x324xbf16, #tpu.memory_space<vmem>>, %arg3: memref<8x72xbf16, #tpu.memory_space<vmem>>, %arg4: memref<1x384xf32, #tpu.memory_space<vmem>>, %arg5: memref<1x8x384xbf16, #tpu.memory_space<vmem>>, %arg6: memref<1x8x1xf32, #tpu.memory_space<vmem>>, %arg7: memref<1x8x1xf32, #tpu.memory_space<vmem>>, %arg8: memref<8x531xf32, #tpu.memory_space<vmem>>) attributes {dimension_semantics = [#tpu.dimension_semantics<parallel>, #tpu.dimension_semantics<parallel>], iteration_bounds = array<i64: 2, 1>, scalar_prefetch = 0 : i64, scratch_operands = 1 : i64, tpu.core_type = #tpu.core_type<tc>, window_params = [{transform_indices = @transform_0, window_bounds = array<i64: 1, 8, 324>}, {transform_indices = @transform_1, window_bounds = array<i64: 8, 72>}, {pipeline_mode = #tpu.pipeline_mode<synchronous>, transform_indices = @transform_2, window_bounds = array<i64: 1, 384>}, {transform_indices = @transform_3, window_bounds = array<i64: 1, 8, 384>}, {transform_indices = @transform_4, window_bounds = array<i64: 1, 8, 1>}, {transform_indices = @transform_5, window_bounds = array<i64: 1, 8, 1>}]} {
    %cst = arith.constant 0.000000e+00 : f32
    %0 = vector.broadcast %cst : f32 to vector<8x128xf32>
    %c0 = arith.constant 0 : index
    %c0_0 = arith.constant 0 : index
    %1 = vector.load %arg8[%c0, %c0_0] : memref<8x531xf32, #tpu.memory_space<vmem>>, vector<8x128xf32>
    tpu.vector_store %arg8[%c0, %c0_0], %0 {strides = array<i32>} : memref<8x531xf32, #tpu.memory_space<vmem>>, vector<8x128xf32>,
    %cst_1 = arith.constant 0.000000e+00 : f32
    %2 = vector.broadcast %cst_1 : f32 to vector<8x79xf32>
    %c0_2 = arith.constant 0 : index
    %c452 = arith.constant 452 : index
    %3 = vector.load %arg8[%c0_2, %c452] : memref<8x531xf32, #tpu.memory_space<vmem>>, vector<8x79xf32>
    tpu.vector_store %arg8[%c0_2, %c452], %2 {strides = array<i32>} : memref<8x531xf32, #tpu.memory_space<vmem>>, vector<8x79xf32>,
    %c0_3 = arith.constant 0 : index
    %c0_4 = arith.constant 0 : index
    %c0_5 = arith.constant 0 : index
    %4 = vector.load %arg2[%c0_3, %c0_4, %c0_5] : memref<1x8x324xbf16, #tpu.memory_space<vmem>>, vector<1x8x324xbf16>
    %5 = vector.shape_cast %4 : vector<1x8x324xbf16> to vector<8x324xbf16>
    %6 = arith.extf %5 : vector<8x324xbf16> to vector<8x324xf32>
    %c0_6 = arith.constant 0 : index
    %c128 = arith.constant 128 : index
    %7 = vector.load %arg8[%c0_6, %c128] : memref<8x531xf32, #tpu.memory_space<vmem>>, vector<8x324xf32>
    tpu.vector_store %arg8[%c0_6, %c128], %6 {strides = array<i32>} : memref<8x531xf32, #tpu.memory_space<vmem>>, vector<8x324xf32>,
    %c0_7 = arith.constant 0 : index
    %c0_8 = arith.constant 0 : index
    %8 = vector.load %arg8[%c0_7, %c0_8] : memref<8x531xf32, #tpu.memory_space<vmem>>, vector<8x531xf32>
    %c0_9 = arith.constant 0 : index
    %c0_10 = arith.constant 0 : index
    %9 = vector.load %arg3[%c0_9, %c0_10] : memref<8x72xbf16, #tpu.memory_space<vmem>>, vector<8x72xbf16>
    %10 = vector.extract_strided_slice %8 {offsets = [0, 109], sizes = [8, 384], strides = [1, 1]} : vector<8x531xf32> to vector<8x384xf32>
    %11 = vector.extract_strided_slice %8 {offsets = [0, 110], sizes = [8, 384], strides = [1, 1]} : vector<8x531xf32> to vector<8x384xf32>
    %12 = vector.extract_strided_slice %8 {offsets = [0, 111], sizes = [8, 384], strides = [1, 1]} : vector<8x531xf32> to vector<8x384xf32>
    %13 = vector.extract_strided_slice %8 {offsets = [0, 127], sizes = [8, 384], strides = [1, 1]} : vector<8x531xf32> to vector<8x384xf32>
    %14 = vector.extract_strided_slice %8 {offsets = [0, 128], sizes = [8, 384], strides = [1, 1]} : vector<8x531xf32> to vector<8x384xf32>
    %15 = vector.extract_strided_slice %8 {offsets = [0, 129], sizes = [8, 384], strides = [1, 1]} : vector<8x531xf32> to vector<8x384xf32>
    %16 = vector.extract_strided_slice %8 {offsets = [0, 145], sizes = [8, 384], strides = [1, 1]} : vector<8x531xf32> to vector<8x384xf32>
    %17 = vector.extract_strided_slice %8 {offsets = [0, 146], sizes = [8, 384], strides = [1, 1]} : vector<8x531xf32> to vector<8x384xf32>
    %18 = vector.extract_strided_slice %8 {offsets = [0, 147], sizes = [8, 384], strides = [1, 1]} : vector<8x531xf32> to vector<8x384xf32>
    %19 = tpu.concatenate %10, %11, %12, %13, %14, %15, %16, %17, %18 in 0 : vector<8x384xf32>, vector<8x384xf32>, vector<8x384xf32>, vector<8x384xf32>, vector<8x384xf32>, vector<8x384xf32>, vector<8x384xf32>, vector<8x384xf32>, vector<8x384xf32> -> vector<72x384xf32>
    %20 = arith.truncf %19 : vector<72x384xf32> to vector<72x384xbf16>
    %cst_11 = arith.constant dense<0.000000e+00> : vector<8x384xf32>
    %21 = tpu.matmul %9, %20, %cst_11 {dimension_numbers = #tpu.dot_dimension_numbers<[1], [0], [0], [1], [0, 0, 1, 1], [], []>} : vector<8x72xbf16>, vector<72x384xbf16>, vector<8x384xf32> -> vector<8x384xf32>
    %c0_12 = arith.constant 0 : index
    %c0_13 = arith.constant 0 : index
    %22 = vector.load %arg4[%c0_12, %c0_13] : memref<1x384xf32, #tpu.memory_space<vmem>>, vector<1x384xf32>
    %23 = vector.broadcast %22 : vector<1x384xf32> to vector<8x384xf32>
    %24 = arith.mulf %21, %23 : vector<8x384xf32>
    %cst_14 = arith.constant dense<0.000000e+00> : vector<8xf32>
    %25 = vector.multi_reduction <add>, %24, %cst_14 [1] : vector<8x384xf32> to vector<8xf32>
    %26 = vector.shape_cast %25 : vector<8xf32> to vector<8x1xf32>
    %cst_15 = arith.constant 3.906250e-03 : f32
    %27 = vector.broadcast %cst_15 : f32 to vector<8x1xf32>
    %28 = arith.mulf %26, %27 : vector<8x1xf32>
    %29 = vector.broadcast %28 : vector<8x1xf32> to vector<8x384xf32>
    %30 = arith.subf %21, %29 : vector<8x384xf32>
    %31 = vector.broadcast %22 : vector<1x384xf32> to vector<8x384xf32>
    %32 = arith.mulf %30, %31 : vector<8x384xf32>
    %33 = arith.mulf %32, %32 : vector<8x384xf32>
    %cst_16 = arith.constant dense<0.000000e+00> : vector<8xf32>
    %34 = vector.multi_reduction <add>, %33, %cst_16 [1] : vector<8x384xf32> to vector<8xf32>
    %35 = vector.shape_cast %34 : vector<8xf32> to vector<8x1xf32>
    %36 = arith.truncf %21 : vector<8x384xf32> to vector<8x384xbf16>
    %37 = vector.shape_cast %36 : vector<8x384xbf16> to vector<1x8x384xbf16>
    %c0_17 = arith.constant 0 : index
    %c0_18 = arith.constant 0 : index
    %c0_19 = arith.constant 0 : index
    %38 = vector.load %arg5[%c0_17, %c0_18, %c0_19] : memref<1x8x384xbf16, #tpu.memory_space<vmem>>, vector<1x8x384xbf16>
    tpu.vector_store %arg5[%c0_17, %c0_18, %c0_19], %37 {strides = array<i32>} : memref<1x8x384xbf16, #tpu.memory_space<vmem>>, vector<1x8x384xbf16>,
    %39 = vector.shape_cast %28 : vector<8x1xf32> to vector<1x8x1xf32>
    %c0_20 = arith.constant 0 : index
    %c0_21 = arith.constant 0 : index
    %c0_22 = arith.constant 0 : index
    %40 = vector.load %arg6[%c0_20, %c0_21, %c0_22] : memref<1x8x1xf32, #tpu.memory_space<vmem>>, vector<1x8x1xf32>
    tpu.vector_store %arg6[%c0_20, %c0_21, %c0_22], %39 {strides = array<i32>} : memref<1x8x1xf32, #tpu.memory_space<vmem>>, vector<1x8x1xf32>,
    %41 = vector.shape_cast %35 : vector<8x1xf32> to vector<1x8x1xf32>
    %c0_23 = arith.constant 0 : index
    %c0_24 = arith.constant 0 : index
    %c0_25 = arith.constant 0 : index
    %42 = vector.load %arg7[%c0_23, %c0_24, %c0_25] : memref<1x8x1xf32, #tpu.memory_space<vmem>>, vector<1x8x1xf32>
    tpu.vector_store %arg7[%c0_23, %c0_24, %c0_25], %41 {strides = array<i32>} : memref<1x8x1xf32, #tpu.memory_space<vmem>>, vector<1x8x1xf32>,
    return
  }
  func.func @transform_0(%arg0: i32, %arg1: i32) -> (i32, i32, i32) {
    %c0_i32 = arith.constant 0 : i32
    %c0_i32_0 = arith.constant 0 : i32
    %c0_i32_1 = arith.constant 0 : i32
    return %arg0, %c0_i32, %c0_i32_0 : i32, i32, i32
  }
  func.func @transform_1(%arg0: i32, %arg1: i32) -> (i32, i32) {
    %c0_i32 = arith.constant 0 : i32
    %c0_i32_0 = arith.constant 0 : i32
    return %arg1, %c0_i32 : i32, i32
  }
  func.func @transform_2(%arg0: i32, %arg1: i32) -> (i32, i32) {
    %c0_i32 = arith.constant 0 : i32
    %c0_i32_0 = arith.constant 0 : i32
    %c0_i32_1 = arith.constant 0 : i32
    return %c0_i32, %c0_i32_0 : i32, i32
  }
  func.func @transform_3(%arg0: i32, %arg1: i32) -> (i32, i32, i32) {
    %c0_i32 = arith.constant 0 : i32
    %c0_i32_0 = arith.constant 0 : i32
    return %arg0, %arg1, %c0_i32 : i32, i32, i32
  }
  func.func @transform_4(%arg0: i32, %arg1: i32) -> (i32, i32, i32) {
    %c0_i32 = arith.constant 0 : i32
    %c0_i32_0 = arith.constant 0 : i32
    return %arg0, %arg1, %c0_i32 : i32, i32, i32
  }
  func.func @transform_5(%arg0: i32, %arg1: i32) -> (i32, i32, i32) {
    %c0_i32 = arith.constant 0 : i32
    %c0_i32_0 = arith.constant 0 : i32
    return %arg0, %arg1, %c0_i32 : i32, i32, i32
  }
}

module attributes {stable_mosaic.version = 11 : i64} {
  func.func @mid_kernel(%arg0: i32, %arg1: i32, %arg2: memref<1x8x384xbf16, #tpu.memory_space<vmem>>, %arg3: memref<8x72xbf16, #tpu.memory_space<vmem>>, %arg4: memref<8x1xf32, #tpu.memory_space<vmem>>, %arg5: memref<8x1xf32, #tpu.memory_space<vmem>>, %arg6: memref<1x384xf32, #tpu.memory_space<vmem>>, %arg7: memref<1x8x384xbf16, #tpu.memory_space<vmem>>, %arg8: memref<1x8x1xf32, #tpu.memory_space<vmem>>, %arg9: memref<1x8x1xf32, #tpu.memory_space<vmem>>, %arg10: memref<8x531xf32, #tpu.memory_space<vmem>>) attributes {dimension_semantics = [#tpu.dimension_semantics<parallel>, #tpu.dimension_semantics<parallel>], iteration_bounds = array<i64: 2, 1>, scalar_prefetch = 0 : i64, scratch_operands = 1 : i64, tpu.core_type = #tpu.core_type<tc>, window_params = [{transform_indices = @transform_0, window_bounds = array<i64: 1, 8, 384>}, {transform_indices = @transform_1, window_bounds = array<i64: 8, 72>}, {pipeline_mode = #tpu.pipeline_mode<synchronous>, transform_indices = @transform_2, window_bounds = array<i64: 8, 1>}, {pipeline_mode = #tpu.pipeline_mode<synchronous>, transform_indices = @transform_3, window_bounds = array<i64: 8, 1>}, {pipeline_mode = #tpu.pipeline_mode<synchronous>, transform_indices = @transform_4, window_bounds = array<i64: 1, 384>}, {transform_indices = @transform_5, window_bounds = array<i64: 1, 8, 384>}, {transform_indices = @transform_6, window_bounds = array<i64: 1, 8, 1>}, {transform_indices = @transform_7, window_bounds = array<i64: 1, 8, 1>}]} {
    %c0 = arith.constant 0 : index
    %c0_0 = arith.constant 0 : index
    %0 = vector.load %arg6[%c0, %c0_0] : memref<1x384xf32, #tpu.memory_space<vmem>>, vector<1x384xf32>
    %c0_1 = arith.constant 0 : index
    %c0_2 = arith.constant 0 : index
    %c0_3 = arith.constant 0 : index
    %1 = vector.load %arg2[%c0_1, %c0_2, %c0_3] : memref<1x8x384xbf16, #tpu.memory_space<vmem>>, vector<1x8x384xbf16>
    %2 = vector.shape_cast %1 : vector<1x8x384xbf16> to vector<8x384xbf16>
    %3 = arith.extf %2 : vector<8x384xbf16> to vector<8x384xf32>
    %c0_4 = arith.constant 0 : index
    %c0_5 = arith.constant 0 : index
    %4 = vector.load %arg4[%c0_4, %c0_5] : memref<8x1xf32, #tpu.memory_space<vmem>>, vector<8x1xf32>
    %5 = vector.broadcast %4 : vector<8x1xf32> to vector<8x384xf32>
    %6 = arith.mulf %3, %5 : vector<8x384xf32>
    %c0_6 = arith.constant 0 : index
    %c0_7 = arith.constant 0 : index
    %7 = vector.load %arg5[%c0_6, %c0_7] : memref<8x1xf32, #tpu.memory_space<vmem>>, vector<8x1xf32>
    %8 = vector.broadcast %7 : vector<8x1xf32> to vector<8x384xf32>
    %9 = arith.addf %6, %8 : vector<8x384xf32>
    %cst = arith.constant 0.000000e+00 : f32
    %10 = vector.broadcast %cst : f32 to vector<8x384xf32>
    %11 = arith.maximumf %9, %10 : vector<8x384xf32>
    %12 = vector.broadcast %0 : vector<1x384xf32> to vector<8x384xf32>
    %13 = arith.mulf %11, %12 : vector<8x384xf32>
    %cst_8 = arith.constant 0.000000e+00 : f32
    %14 = vector.broadcast %cst_8 : f32 to vector<8x128xf32>
    %c0_9 = arith.constant 0 : index
    %c0_10 = arith.constant 0 : index
    %15 = vector.load %arg10[%c0_9, %c0_10] : memref<8x531xf32, #tpu.memory_space<vmem>>, vector<8x128xf32>
    tpu.vector_store %arg10[%c0_9, %c0_10], %14 {strides = array<i32>} : memref<8x531xf32, #tpu.memory_space<vmem>>, vector<8x128xf32>,
    %cst_11 = arith.constant 0.000000e+00 : f32
    %16 = vector.broadcast %cst_11 : f32 to vector<8x19xf32>
    %c0_12 = arith.constant 0 : index
    %c512 = arith.constant 512 : index
    %17 = vector.load %arg10[%c0_12, %c512] : memref<8x531xf32, #tpu.memory_space<vmem>>, vector<8x19xf32>
    tpu.vector_store %arg10[%c0_12, %c512], %16 {strides = array<i32>} : memref<8x531xf32, #tpu.memory_space<vmem>>, vector<8x19xf32>,
    %c0_13 = arith.constant 0 : index
    %c128 = arith.constant 128 : index
    %18 = vector.load %arg10[%c0_13, %c128] : memref<8x531xf32, #tpu.memory_space<vmem>>, vector<8x384xf32>
    tpu.vector_store %arg10[%c0_13, %c128], %13 {strides = array<i32>} : memref<8x531xf32, #tpu.memory_space<vmem>>, vector<8x384xf32>,
    %c0_14 = arith.constant 0 : index
    %c0_15 = arith.constant 0 : index
    %19 = vector.load %arg10[%c0_14, %c0_15] : memref<8x531xf32, #tpu.memory_space<vmem>>, vector<8x531xf32>
    %c0_16 = arith.constant 0 : index
    %c0_17 = arith.constant 0 : index
    %20 = vector.load %arg3[%c0_16, %c0_17] : memref<8x72xbf16, #tpu.memory_space<vmem>>, vector<8x72xbf16>
    %21 = vector.extract_strided_slice %19 {offsets = [0, 109], sizes = [8, 384], strides = [1, 1]} : vector<8x531xf32> to vector<8x384xf32>
    %22 = vector.extract_strided_slice %19 {offsets = [0, 110], sizes = [8, 384], strides = [1, 1]} : vector<8x531xf32> to vector<8x384xf32>
    %23 = vector.extract_strided_slice %19 {offsets = [0, 111], sizes = [8, 384], strides = [1, 1]} : vector<8x531xf32> to vector<8x384xf32>
    %24 = vector.extract_strided_slice %19 {offsets = [0, 127], sizes = [8, 384], strides = [1, 1]} : vector<8x531xf32> to vector<8x384xf32>
    %25 = vector.extract_strided_slice %19 {offsets = [0, 128], sizes = [8, 384], strides = [1, 1]} : vector<8x531xf32> to vector<8x384xf32>
    %26 = vector.extract_strided_slice %19 {offsets = [0, 129], sizes = [8, 384], strides = [1, 1]} : vector<8x531xf32> to vector<8x384xf32>
    %27 = vector.extract_strided_slice %19 {offsets = [0, 145], sizes = [8, 384], strides = [1, 1]} : vector<8x531xf32> to vector<8x384xf32>
    %28 = vector.extract_strided_slice %19 {offsets = [0, 146], sizes = [8, 384], strides = [1, 1]} : vector<8x531xf32> to vector<8x384xf32>
    %29 = vector.extract_strided_slice %19 {offsets = [0, 147], sizes = [8, 384], strides = [1, 1]} : vector<8x531xf32> to vector<8x384xf32>
    %30 = tpu.concatenate %21, %22, %23, %24, %25, %26, %27, %28, %29 in 0 : vector<8x384xf32>, vector<8x384xf32>, vector<8x384xf32>, vector<8x384xf32>, vector<8x384xf32>, vector<8x384xf32>, vector<8x384xf32>, vector<8x384xf32>, vector<8x384xf32> -> vector<72x384xf32>
    %31 = arith.truncf %30 : vector<72x384xf32> to vector<72x384xbf16>
    %cst_18 = arith.constant dense<0.000000e+00> : vector<8x384xf32>
    %32 = tpu.matmul %20, %31, %cst_18 {dimension_numbers = #tpu.dot_dimension_numbers<[1], [0], [0], [1], [0, 0, 1, 1], [], []>} : vector<8x72xbf16>, vector<72x384xbf16>, vector<8x384xf32> -> vector<8x384xf32>
    %33 = vector.broadcast %0 : vector<1x384xf32> to vector<8x384xf32>
    %34 = arith.mulf %32, %33 : vector<8x384xf32>
    %cst_19 = arith.constant dense<0.000000e+00> : vector<8xf32>
    %35 = vector.multi_reduction <add>, %34, %cst_19 [1] : vector<8x384xf32> to vector<8xf32>
    %36 = vector.shape_cast %35 : vector<8xf32> to vector<8x1xf32>
    %cst_20 = arith.constant 3.906250e-03 : f32
    %37 = vector.broadcast %cst_20 : f32 to vector<8x1xf32>
    %38 = arith.mulf %36, %37 : vector<8x1xf32>
    %39 = vector.broadcast %38 : vector<8x1xf32> to vector<8x384xf32>
    %40 = arith.subf %32, %39 : vector<8x384xf32>
    %41 = vector.broadcast %0 : vector<1x384xf32> to vector<8x384xf32>
    %42 = arith.mulf %40, %41 : vector<8x384xf32>
    %43 = arith.mulf %42, %42 : vector<8x384xf32>
    %cst_21 = arith.constant dense<0.000000e+00> : vector<8xf32>
    %44 = vector.multi_reduction <add>, %43, %cst_21 [1] : vector<8x384xf32> to vector<8xf32>
    %45 = vector.shape_cast %44 : vector<8xf32> to vector<8x1xf32>
    %46 = arith.truncf %32 : vector<8x384xf32> to vector<8x384xbf16>
    %47 = vector.shape_cast %46 : vector<8x384xbf16> to vector<1x8x384xbf16>
    %c0_22 = arith.constant 0 : index
    %c0_23 = arith.constant 0 : index
    %c0_24 = arith.constant 0 : index
    %48 = vector.load %arg7[%c0_22, %c0_23, %c0_24] : memref<1x8x384xbf16, #tpu.memory_space<vmem>>, vector<1x8x384xbf16>
    tpu.vector_store %arg7[%c0_22, %c0_23, %c0_24], %47 {strides = array<i32>} : memref<1x8x384xbf16, #tpu.memory_space<vmem>>, vector<1x8x384xbf16>,
    %49 = vector.shape_cast %38 : vector<8x1xf32> to vector<1x8x1xf32>
    %c0_25 = arith.constant 0 : index
    %c0_26 = arith.constant 0 : index
    %c0_27 = arith.constant 0 : index
    %50 = vector.load %arg8[%c0_25, %c0_26, %c0_27] : memref<1x8x1xf32, #tpu.memory_space<vmem>>, vector<1x8x1xf32>
    tpu.vector_store %arg8[%c0_25, %c0_26, %c0_27], %49 {strides = array<i32>} : memref<1x8x1xf32, #tpu.memory_space<vmem>>, vector<1x8x1xf32>,
    %51 = vector.shape_cast %45 : vector<8x1xf32> to vector<1x8x1xf32>
    %c0_28 = arith.constant 0 : index
    %c0_29 = arith.constant 0 : index
    %c0_30 = arith.constant 0 : index
    %52 = vector.load %arg9[%c0_28, %c0_29, %c0_30] : memref<1x8x1xf32, #tpu.memory_space<vmem>>, vector<1x8x1xf32>
    tpu.vector_store %arg9[%c0_28, %c0_29, %c0_30], %51 {strides = array<i32>} : memref<1x8x1xf32, #tpu.memory_space<vmem>>, vector<1x8x1xf32>,
    return
  }
  func.func @transform_0(%arg0: i32, %arg1: i32) -> (i32, i32, i32) {
    %c0_i32 = arith.constant 0 : i32
    %c0_i32_0 = arith.constant 0 : i32
    %c0_i32_1 = arith.constant 0 : i32
    return %arg0, %c0_i32, %c0_i32_0 : i32, i32, i32
  }
  func.func @transform_1(%arg0: i32, %arg1: i32) -> (i32, i32) {
    %c0_i32 = arith.constant 0 : i32
    %c0_i32_0 = arith.constant 0 : i32
    return %arg1, %c0_i32 : i32, i32
  }
  func.func @transform_2(%arg0: i32, %arg1: i32) -> (i32, i32) {
    %c0_i32 = arith.constant 0 : i32
    %c0_i32_0 = arith.constant 0 : i32
    %c0_i32_1 = arith.constant 0 : i32
    return %c0_i32, %c0_i32_0 : i32, i32
  }
  func.func @transform_3(%arg0: i32, %arg1: i32) -> (i32, i32) {
    %c0_i32 = arith.constant 0 : i32
    %c0_i32_0 = arith.constant 0 : i32
    %c0_i32_1 = arith.constant 0 : i32
    return %c0_i32, %c0_i32_0 : i32, i32
  }
  func.func @transform_4(%arg0: i32, %arg1: i32) -> (i32, i32) {
    %c0_i32 = arith.constant 0 : i32
    %c0_i32_0 = arith.constant 0 : i32
    %c0_i32_1 = arith.constant 0 : i32
    return %c0_i32, %c0_i32_0 : i32, i32
  }
  func.func @transform_5(%arg0: i32, %arg1: i32) -> (i32, i32, i32) {
    %c0_i32 = arith.constant 0 : i32
    %c0_i32_0 = arith.constant 0 : i32
    return %arg0, %arg1, %c0_i32 : i32, i32, i32
  }
  func.func @transform_6(%arg0: i32, %arg1: i32) -> (i32, i32, i32) {
    %c0_i32 = arith.constant 0 : i32
    %c0_i32_0 = arith.constant 0 : i32
    return %arg0, %arg1, %c0_i32 : i32, i32, i32
  }
  func.func @transform_7(%arg0: i32, %arg1: i32) -> (i32, i32, i32) {
    %c0_i32 = arith.constant 0 : i32
    %c0_i32_0 = arith.constant 0 : i32
    return %arg0, %arg1, %c0_i32 : i32, i32, i32
  }
}

module attributes {stable_mosaic.version = 11 : i64} {
  func.func @out_kernel(%arg0: i32, %arg1: i32, %arg2: memref<1x8x384xbf16, #tpu.memory_space<vmem>>, %arg3: memref<1x8x324xbf16, #tpu.memory_space<vmem>>, %arg4: memref<8x1xf32, #tpu.memory_space<vmem>>, %arg5: memref<8x1xf32, #tpu.memory_space<vmem>>, %arg6: memref<1x8x324xf32, #tpu.memory_space<vmem>>) attributes {dimension_semantics = [#tpu.dimension_semantics<parallel>, #tpu.dimension_semantics<parallel>], iteration_bounds = array<i64: 2, 1>, scalar_prefetch = 0 : i64, scratch_operands = 0 : i64, tpu.core_type = #tpu.core_type<tc>, window_params = [{transform_indices = @transform_0, window_bounds = array<i64: 1, 8, 384>}, {transform_indices = @transform_1, window_bounds = array<i64: 1, 8, 324>}, {transform_indices = @transform_2, window_bounds = array<i64: 8, 1>}, {transform_indices = @transform_3, window_bounds = array<i64: 8, 1>}, {transform_indices = @transform_4, window_bounds = array<i64: 1, 8, 324>}]} {
    %c0 = arith.constant 0 : index
    %c0_0 = arith.constant 0 : index
    %c0_1 = arith.constant 0 : index
    %0 = vector.load %arg2[%c0, %c0_0, %c0_1] : memref<1x8x384xbf16, #tpu.memory_space<vmem>>, vector<1x8x384xbf16>
    %1 = vector.shape_cast %0 : vector<1x8x384xbf16> to vector<8x384xbf16>
    %2 = arith.extf %1 : vector<8x384xbf16> to vector<8x384xf32>
    %c0_2 = arith.constant 0 : index
    %c0_3 = arith.constant 0 : index
    %3 = vector.load %arg4[%c0_2, %c0_3] : memref<8x1xf32, #tpu.memory_space<vmem>>, vector<8x1xf32>
    %4 = vector.broadcast %3 : vector<8x1xf32> to vector<8x384xf32>
    %5 = arith.mulf %2, %4 : vector<8x384xf32>
    %c0_4 = arith.constant 0 : index
    %c0_5 = arith.constant 0 : index
    %6 = vector.load %arg5[%c0_4, %c0_5] : memref<8x1xf32, #tpu.memory_space<vmem>>, vector<8x1xf32>
    %7 = vector.broadcast %6 : vector<8x1xf32> to vector<8x384xf32>
    %8 = arith.addf %5, %7 : vector<8x384xf32>
    %c0_6 = arith.constant 0 : index
    %c0_7 = arith.constant 0 : index
    %c0_8 = arith.constant 0 : index
    %9 = vector.load %arg3[%c0_6, %c0_7, %c0_8] : memref<1x8x324xbf16, #tpu.memory_space<vmem>>, vector<1x8x324xbf16>
    %10 = vector.shape_cast %9 : vector<1x8x324xbf16> to vector<8x324xbf16>
    %11 = arith.extf %10 : vector<8x324xbf16> to vector<8x324xf32>
    %12 = vector.extract_strided_slice %8 {offsets = [0, 0], sizes = [8, 324], strides = [1, 1]} : vector<8x384xf32> to vector<8x324xf32>
    %13 = arith.addf %12, %11 : vector<8x324xf32>
    %cst = arith.constant 0.000000e+00 : f32
    %14 = vector.broadcast %cst : f32 to vector<8x324xf32>
    %15 = arith.maximumf %13, %14 : vector<8x324xf32>
    %16 = vector.shape_cast %15 : vector<8x324xf32> to vector<1x8x324xf32>
    %c0_9 = arith.constant 0 : index
    %c0_10 = arith.constant 0 : index
    %c0_11 = arith.constant 0 : index
    %17 = vector.load %arg6[%c0_9, %c0_10, %c0_11] : memref<1x8x324xf32, #tpu.memory_space<vmem>>, vector<1x8x324xf32>
    tpu.vector_store %arg6[%c0_9, %c0_10, %c0_11], %16 {strides = array<i32>} : memref<1x8x324xf32, #tpu.memory_space<vmem>>, vector<1x8x324xf32>,
    return
  }
  func.func @transform_0(%arg0: i32, %arg1: i32) -> (i32, i32, i32) {
    %c0_i32 = arith.constant 0 : i32
    %c0_i32_0 = arith.constant 0 : i32
    return %arg0, %arg1, %c0_i32 : i32, i32, i32
  }
  func.func @transform_1(%arg0: i32, %arg1: i32) -> (i32, i32, i32) {
    %c0_i32 = arith.constant 0 : i32
    %c0_i32_0 = arith.constant 0 : i32
    return %arg0, %arg1, %c0_i32 : i32, i32, i32
  }
  func.func @transform_2(%arg0: i32, %arg1: i32) -> (i32, i32) {
    %c0_i32 = arith.constant 0 : i32
    %c0_i32_0 = arith.constant 0 : i32
    return %arg1, %c0_i32 : i32, i32
  }
  func.func @transform_3(%arg0: i32, %arg1: i32) -> (i32, i32) {
    %c0_i32 = arith.constant 0 : i32
    %c0_i32_0 = arith.constant 0 : i32
    return %arg1, %c0_i32 : i32, i32
  }
  func.func @transform_4(%arg0: i32, %arg1: i32) -> (i32, i32, i32) {
    %c0_i32 = arith.constant 0 : i32
    %c0_i32_0 = arith.constant 0 : i32
    return %arg0, %arg1, %c0_i32 : i32, i32, i32
  }
}

</mosaic_0001>

<llo_original>
// kernel: residual_block_v2.5
$region0: #{residual_block_v2.5}
  #allocation0 [shape = 'u32[]', space=smem, size = 0x4, offset = 0x4, fixed_abs, tag = 'smem constant byte address 0x4 - core index']
  #allocation1 [shape = 'u32[144,128]{1,0:T(1,128)}', space=vmem, size = 0x12000, scoped, tag = 'internal scratch']
  %s0 = inlined_call_operand.hbm [shape: bf16[2,8,384], index: 0, kind: input, shape index: {}]
  %s1 = inlined_call_operand.hbm [shape: bf16[2,8,324], index: 1, kind: input, shape index: {}]
  %s2 = inlined_call_operand.hbm [shape: f32[8,1], index: 2, kind: input, shape index: {}]
  %s3 = inlined_call_operand.hbm [shape: f32[8,1], index: 3, kind: input, shape index: {}]
  %s4 = inlined_call_operand.hbm [shape: f32[2,8,324], index: 4, kind: output, shape index: {}]
  %s5 = sld [smem:[#allocation0]]
  $region65: #{residual_block_v2.5} parent=0
    _
  %s7 = ssub.s32 1, %s5
  %s8 = scalar_select 0, %s7, %s5
  $region1: #{residual_block_v2.5} parent=0
    #allocation2 [shape = 'u8[12288]{0}', space=vmem, size = 0x3000, scoped, tag = 'input window, operand 0']
    #allocation3 [shape = 's32[2]{0}', space=sflag, size = 0x8, scoped, tag = 'scoped memory for residual_block_v2.5']
    #allocation4 [shape = 's32[2]{0}', space=sflag, size = 0x8, scoped, tag = 'scoped memory for residual_block_v2.5']
    #allocation5 [shape = 'u8[12288]{0}', space=vmem, size = 0x3000, scoped, tag = 'input window, operand 1']
    #allocation6 [shape = 's32[2]{0}', space=sflag, size = 0x8, scoped, tag = 'scoped memory for residual_block_v2.5']
    #allocation7 [shape = 'u8[4096]{0}', space=vmem, size = 0x1000, scoped, tag = 'input window, operand 2, single buffered']
    #allocation8 [shape = 'u8[4096]{0}', space=vmem, size = 0x1000, scoped, tag = 'input window, operand 3, single buffered']
    #allocation9 [shape = 's32[1]{0}', space=sflag, size = 0x4, scoped, tag = 'scoped memory for residual_block_v2.5']
    #allocation10 [shape = 'u8[24576]{0}', space=vmem, size = 0x6000, scoped, tag = 'output window, operand 0']
    %9 = vsyncpa [#allocation3], 0
    %s10 = scalar_lea.sflag [#allocation3], 1
    %11 = vsyncpa %s10, 0
    %12 = vsyncpa [#allocation6], 0
    %s13 = scalar_lea.sflag [#allocation6], 1
    %14 = vsyncpa %s13, 0
    %15 = vsyncpa [#allocation9], 0
    %16 = vsyncpa [#allocation4], 0
    %s17 = scalar_lea.sflag [#allocation4], 1
    %18 = vsyncpa %s17, 0
    loop: start=0, step=1, limit=4
    $region2: #{residual_block_v2.5} parent=1 // loop_pre_header
      _
    $region3: #{residual_block_v2.5} parent=1 // loop_header
      %s20 = sphi 0, %s24
      %p21 = scmp.ge.s32.totalorder %s20, 4
      %s27 = sphi 0, %s39
      %s28 = sphi 0, %s35
      %s29 = sphi 0, %s27
      %s30 = sphi 0, %s28
      %s31 = sphi 0, %s29
      %s32 = sphi 0, %s30
      %s44 = sphi 0, %s46
      %s47 = sphi 0, %s44
      %s48 = sphi 0, %s47
      %s64 = sphi 0, %s48
      %s72 = sphi 0, %s74
      %s75 = sphi 0, %s72
      %s76 = sphi 0, %s75
      %s92 = sphi 0, %s76
      %s98 = sphi 0, %s100
      %s101 = sphi 0, %s98
      %s102 = sphi 0, %s101
      %s118 = sphi 0, %s102
      %s124 = sphi 0, %s126
      %s127 = sphi 0, %s124
      %s128 = sphi 0, %s127
      %s144 = sphi 0, %s128
      %s152 = sphi 0, %s154
      %s155 = sphi 0, %s152
      %s156 = sphi 0, %s155
      %s172 = sphi 0, %s156
    $region4: #{residual_block_v2.5} parent=1 // loop_header_branch
      %23 = sbr.rel (%p21) target = $region8
    $region5: #{residual_block_v2.5} parent=1 // loop_body
      %s25 = ssub.s32 %s20, 1
      %s26 = ssub.s32 %s20, 2
      %s33 = sadd.s32 1, %s28
      %p34 = scmp.ge.s32.totalorder %s33, 1
      %s35 = scalar_select %p34, 0, %s33
      %s36 = sadd.s32 1, %s27
      %s37 = scalar_select %p34, %s36, %s27
      %p38 = scmp.ge.s32.totalorder %s37, 2
      %s39 = scalar_select %p38, 0, %s37
      %s40 = ssub.s32 %s27, %s39
      %s41 = ssub.s32 %s28, %s35
      %s42 = sor.u32 %s40, %s41
      %p43 = scmp.eq.s32.totalorder %s42, 0
      %s45 = sadd.s32 %s44, 1
      %s46 = scalar_select %p43, %s44, %s45
      %p49 = pneg %p43
      %p50 = scmp.eq.s32.totalorder %s20, 1
      %p51 = por %p49, %p50
      %p52 = scmp.ne.s32.totalorder %s44, %s47
      %p53 = scmp.eq.s32.totalorder %s20, 0
      %p54 = por %p52, %p53
      %p55 = scmp.ne.s32.totalorder %s44, %s47
      %p56 = scmp.eq.s32.totalorder %s25, 1
      %p57 = por %p55, %p56
      %p58 = scmp.ne.s32.totalorder %s47, %s48
      %p59 = scmp.eq.s32.totalorder %s25, 0
      %p60 = por %p58, %p59
      %p61 = scmp.ne.s32.totalorder %s47, %s48
      %p62 = scmp.eq.s32.totalorder %s26, 1
      %p63 = por %p61, %p62
      %p65 = scmp.ne.s32.totalorder %s48, %s64
      %p66 = scmp.eq.s32.totalorder %s26, 0
      %p67 = por %p65, %p66
      %s68 = ssub.s32 %s27, %s39
      %s69 = ssub.s32 %s28, %s35
      %s70 = sor.u32 %s68, %s69
      %p71 = scmp.eq.s32.totalorder %s70, 0
      %s73 = sadd.s32 %s72, 1
      %s74 = scalar_select %p71, %s72, %s73
      %p77 = pneg %p71
      %p78 = scmp.eq.s32.totalorder %s20, 1
      %p79 = por %p77, %p78
      %p80 = scmp.ne.s32.totalorder %s72, %s75
      %p81 = scmp.eq.s32.totalorder %s20, 0
      %p82 = por %p80, %p81
      %p83 = scmp.ne.s32.totalorder %s72, %s75
      %p84 = scmp.eq.s32.totalorder %s25, 1
      %p85 = por %p83, %p84
      %p86 = scmp.ne.s32.totalorder %s75, %s76
      %p87 = scmp.eq.s32.totalorder %s25, 0
      %p88 = por %p86, %p87
      %p89 = scmp.ne.s32.totalorder %s75, %s76
      %p90 = scmp.eq.s32.totalorder %s26, 1
      %p91 = por %p89, %p90
      %p93 = scmp.ne.s32.totalorder %s76, %s92
      %p94 = scmp.eq.s32.totalorder %s26, 0
      %p95 = por %p93, %p94
      %s96 = ssub.s32 %s28, %s35
      %p97 = scmp.eq.s32.totalorder %s96, 0
      %s99 = sadd.s32 %s98, 1
      %s100 = scalar_select %p97, %s98, %s99
      %p103 = pneg %p97
      %p104 = scmp.eq.s32.totalorder %s20, 1
      %p105 = por %p103, %p104
      %p106 = scmp.ne.s32.totalorder %s98, %s101
      %p107 = scmp.eq.s32.totalorder %s20, 0
      %p108 = por %p106, %p107
      %p109 = scmp.ne.s32.totalorder %s98, %s101
      %p110 = scmp.eq.s32.totalorder %s25, 1
      %p111 = por %p109, %p110
      %p112 = scmp.ne.s32.totalorder %s101, %s102
      %p113 = scmp.eq.s32.totalorder %s25, 0
      %p114 = por %p112, %p113
      %p115 = scmp.ne.s32.totalorder %s101, %s102
      %p116 = scmp.eq.s32.totalorder %s26, 1
      %p117 = por %p115, %p116
      %p119 = scmp.ne.s32.totalorder %s102, %s118
      %p120 = scmp.eq.s32.totalorder %s26, 0
      %p121 = por %p119, %p120
      %s122 = ssub.s32 %s28, %s35
      %p123 = scmp.eq.s32.totalorder %s122, 0
      %s125 = sadd.s32 %s124, 1
      %s126 = scalar_select %p123, %s124, %s125
      %p129 = pneg %p123
      %p130 = scmp.eq.s32.totalorder %s20, 1
      %p131 = por %p129, %p130
      %p132 = scmp.ne.s32.totalorder %s124, %s127
      %p133 = scmp.eq.s32.totalorder %s20, 0
      %p134 = por %p132, %p133
      %p135 = scmp.ne.s32.totalorder %s124, %s127
      %p136 = scmp.eq.s32.totalorder %s25, 1
      %p137 = por %p135, %p136
      %p138 = scmp.ne.s32.totalorder %s127, %s128
      %p139 = scmp.eq.s32.totalorder %s25, 0
      %p140 = por %p138, %p139
      %p141 = scmp.ne.s32.totalorder %s127, %s128
      %p142 = scmp.eq.s32.totalorder %s26, 1
      %p143 = por %p141, %p142
      %p145 = scmp.ne.s32.totalorder %s128, %s144
      %p146 = scmp.eq.s32.totalorder %s26, 0
      %p147 = por %p145, %p146
      %s148 = ssub.s32 %s27, %s39
      %s149 = ssub.s32 %s28, %s35
      %s150 = sor.u32 %s148, %s149
      %p151 = scmp.eq.s32.totalorder %s150, 0
      %s153 = sadd.s32 %s152, 1
      %s154 = scalar_select %p151, %s152, %s153
      %p157 = pneg %p151
      %p158 = scmp.eq.s32.totalorder %s20, 1
      %p159 = por %p157, %p158
      %p160 = scmp.ne.s32.totalorder %s152, %s155
      %p161 = scmp.eq.s32.totalorder %s20, 0
      %p162 = por %p160, %p161
      %p163 = scmp.ne.s32.totalorder %s152, %s155
      %p164 = scmp.eq.s32.totalorder %s25, 1
      %p165 = por %p163, %p164
      %p166 = scmp.ne.s32.totalorder %s155, %s156
      %p167 = scmp.eq.s32.totalorder %s25, 0
      %p168 = por %p166, %p167
      %p169 = scmp.ne.s32.totalorder %s155, %s156
      %p170 = scmp.eq.s32.totalorder %s26, 1
      %p171 = por %p169, %p170
      %p173 = scmp.ne.s32.totalorder %s156, %s172
      %p174 = scmp.eq.s32.totalorder %s26, 0
      %p175 = por %p173, %p174
      %p176 = scmp.le.s32.totalorder 1, %s20
      %p177 = scmp.lt.s32.totalorder %s20, 3
      %p178 = pnand %p176, %p177
      %p179 = pneg %p178
      // Predicated region
      $region9: #{residual_block_v2.5} parent=5 // pred_check
        _
      $region10: #{residual_block_v2.5} parent=5 // pred_check_branch
        %181 = sbr.rel (%p178) target = $region12
      $region11: #{residual_block_v2.5} parent=5 // pred_region
        %s182 = ssub.s32 %s20, 1
        // Predicated region
        $region13: #{residual_block_v2.5} parent=11 // pred_check
          %p183 = pneg %p114
        $region14: #{residual_block_v2.5} parent=11 // pred_check_branch
          %185 = sbr.rel (%p183) target = $region16
        $region15: #{residual_block_v2.5} parent=11 // pred_region
          %s187 = ssub.s32 128, 128
          %188 = vsyncadd [#allocation6], %s187
          %s189 = smul.addr %s30, 128
          %s190 = scalar_lea.hbm %s2, %s189
          %s192 = sshll.u32 [#allocation7], 4
          %s193 = int_to_ptr.vmem [resolvable:$true] %s192
          %195 = dma.hbm_to_vmem [thread:$0]  %s190, 128, %s193, [#allocation6]
        $region16: #{residual_block_v2.5} parent=11 // pred_fallthru
          _
        // Predicated region
        $region17: #{residual_block_v2.5} parent=11 // pred_check
          %p196 = pneg %p140
        $region18: #{residual_block_v2.5} parent=11 // pred_check_branch
          %198 = sbr.rel (%p196) target = $region20
        $region19: #{residual_block_v2.5} parent=11 // pred_region
          %s200 = ssub.s32 128, 128
          %201 = vsyncadd [#allocation9], %s200
          %s202 = smul.addr %s30, 128
          %s203 = scalar_lea.hbm %s3, %s202
          %s205 = sshll.u32 [#allocation8], 4
          %s206 = int_to_ptr.vmem [resolvable:$true] %s205
          %208 = dma.hbm_to_vmem [thread:$0]  %s203, 128, %s206, [#allocation9]
        $region20: #{residual_block_v2.5} parent=11 // pred_fallthru
          _
      $region12: #{residual_block_v2.5} parent=5 // pred_fallthru
        _
      %p209 = scmp.lt.s32.totalorder %s20, 2
      // Predicated region
      $region21: #{residual_block_v2.5} parent=5 // pred_check
        %p210 = pneg %p209
      $region22: #{residual_block_v2.5} parent=5 // pred_check_branch
        %212 = sbr.rel (%p210) target = $region24
      $region23: #{residual_block_v2.5} parent=5 // pred_region
        // Predicated region
        $region25: #{residual_block_v2.5} parent=23 // pred_check
          %p213 = pneg %p54
        $region26: #{residual_block_v2.5} parent=23 // pred_check_branch
          %215 = sbr.rel (%p213) target = $region28
        $region27: #{residual_block_v2.5} parent=23 // pred_region
          %s216 = sand.u32 %s44, 1
          %s217 = scalar_lea.sflag [#allocation3], %s216
          %s218 = sand.u32 %s44, 1
          %s219 = smul.addr %s218, 12
          %s220 = scalar_lea.vmem [#allocation2], %s219
          %s222 = ssub.s32 192, 192
          %223 = vsyncadd %s217, %s222
          %s224 = smul.addr %s28, 3
          %s225 = smul.addr %s27, 3
          %s226 = sadd.s32 %s224, %s225
          %s227 = smul.addr %s226, 64
          %s228 = scalar_lea.hbm %s0, %s227
          %s230 = sshll.u32 %s220, 4
          %s231 = int_to_ptr.vmem [resolvable:$true] %s230
          %233 = dma.hbm_to_vmem [thread:$0]  %s228, 192, %s231, %s217
        $region28: #{residual_block_v2.5} parent=23 // pred_fallthru
          _
        // Predicated region
        $region29: #{residual_block_v2.5} parent=23 // pred_check
          %p234 = pneg %p82
        $region30: #{residual_block_v2.5} parent=23 // pred_check_branch
          %236 = sbr.rel (%p234) target = $region32
        $region31: #{residual_block_v2.5} parent=23 // pred_region
          %s237 = sand.u32 %s20, 1
          %s238 = scalar_lea.sflag [#allocation6], %s237
          %s239 = sand.u32 %s72, 1
          %s240 = smul.addr %s239, 12
          %s241 = scalar_lea.vmem [#allocation5], %s240
          %s243 = ssub.s32 192, 192
          %244 = vsyncadd %s238, %s243
          %s245 = smul.addr %s28, 3
          %s246 = smul.addr %s27, 3
          %s247 = sadd.s32 %s245, %s246
          %s248 = smul.addr %s247, 64
          %s249 = scalar_lea.hbm %s1, %s248
          %s251 = sshll.u32 %s241, 4
          %s252 = int_to_ptr.vmem [resolvable:$true] %s251
          %254 = dma.hbm_to_vmem [thread:$0]  %s249, 192, %s252, %s238
        $region32: #{residual_block_v2.5} parent=23 // pred_fallthru
          _
      $region24: #{residual_block_v2.5} parent=5 // pred_fallthru
        _
      %p255 = scmp.le.s32.totalorder 1, %s20
      %p256 = scmp.lt.s32.totalorder %s20, 3
      %p257 = pnand %p255, %p256
      %p258 = pneg %p257
      // Predicated region
      $region33: #{residual_block_v2.5} parent=5 // pred_check
        _
      $region34: #{residual_block_v2.5} parent=5 // pred_check_branch
        %260 = sbr.rel (%p257) target = $region36
      $region35: #{residual_block_v2.5} parent=5 // pred_region
        %s261 = ssub.s32 %s20, 1
        %s262 = sand.u32 %s47, 1
        %s263 = scalar_lea.sflag [#allocation3], %s262
        %s264 = sand.u32 %s47, 1
        %s265 = smul.addr %s264, 12
        %s266 = scalar_lea.vmem [#allocation2], %s265
        // Predicated region
        $region37: #{residual_block_v2.5} parent=35 // pred_check
          %p267 = pneg %p60
        $region38: #{residual_block_v2.5} parent=35 // pred_check_branch
          %269 = sbr.rel (%p267) target = $region40
        $region39: #{residual_block_v2.5} parent=35 // pred_region
          %270 = dma.done %s263, 192
        $region40: #{residual_block_v2.5} parent=35 // pred_fallthru
          _
        %s271 = sand.u32 %s25, 1
        %s272 = scalar_lea.sflag [#allocation6], %s271
        %s273 = sand.u32 %s75, 1
        %s274 = smul.addr %s273, 12
        %s275 = scalar_lea.vmem [#allocation5], %s274
        // Predicated region
        $region41: #{residual_block_v2.5} parent=35 // pred_check
          %p276 = pneg %p88
        $region42: #{residual_block_v2.5} parent=35 // pred_check_branch
          %278 = sbr.rel (%p276) target = $region44
        $region43: #{residual_block_v2.5} parent=35 // pred_region
          %279 = dma.done %s272, 192
        $region44: #{residual_block_v2.5} parent=35 // pred_fallthru
          _
        // Predicated region
        $region45: #{residual_block_v2.5} parent=35 // pred_check
          %p280 = pneg %p114
        $region46: #{residual_block_v2.5} parent=35 // pred_check_branch
          %282 = sbr.rel (%p280) target = $region48
        $region47: #{residual_block_v2.5} parent=35 // pred_region
          %283 = dma.done [#allocation6], 128
        $region48: #{residual_block_v2.5} parent=35 // pred_fallthru
          _
        // Predicated region
        $region49: #{residual_block_v2.5} parent=35 // pred_check
          %p284 = pneg %p140
        $region50: #{residual_block_v2.5} parent=35 // pred_check_branch
          %286 = sbr.rel (%p284) target = $region52
        $region51: #{residual_block_v2.5} parent=35 // pred_region
          %287 = dma.done [#allocation9], 128
        $region52: #{residual_block_v2.5} parent=35 // pred_fallthru
          _
        %s288 = sand.u32 %s47, 1
        %s289 = scalar_lea.sflag [#allocation3], %s288
        %s290 = sand.u32 %s47, 1
        %s291 = smul.addr %s290, 12
        %s292 = scalar_lea.vmem [#allocation2], %s291
        %p293 = pneg %p60
        %p294 = pneg %p57
        %s295 = sand.u32 %s25, 1
        %s296 = scalar_lea.sflag [#allocation6], %s295
        %s297 = sand.u32 %s75, 1
        %s298 = smul.addr %s297, 12
        %s299 = scalar_lea.vmem [#allocation5], %s298
        %p300 = pneg %p88
        %p301 = pneg %p85
        %p302 = pneg %p114
        %p303 = pneg %p111
        %p304 = pneg %p140
        %p305 = pneg %p137
        %p306 = pneg %p168
        %p307 = pneg %p165
        %s308 = sand.u32 %s155, 1
        %s309 = scalar_lea.sflag [#allocation4], %s308
        %s310 = sand.u32 %s155, 1
        %s311 = smul.addr %s310, 24
        %s312 = scalar_lea.vmem [#allocation10], %s311
        %v313 = vld [vmem:[%s266] sm:$0xff]
        %v314 = vld [vmem:[%s266 + $0x8] sm:$0xf]
        %v315 = vunpack.c.l.bf16 %v313
        %v316 = vunpack.c.h.bf16 %v313
        %v317 = vunpack.c.l.bf16 %v314
        %v318 = vld [vmem:[#allocation7] sm:$0xff]
        %320 = vset.pattern.permute.xlu0 0
        %321 = vperm.xlu0 %320, %v318
        %v322 = vpop.permute.xlu0 %321
        %v324 = vmul.f32 %v315, %v322
        %v325 = vmul.f32 %v316, %v322
        %v326 = vmul.f32 %v317, %v322
        %v327 = vld [vmem:[#allocation8] sm:$0xff]
        %329 = vset.pattern.permute.xlu0 0
        %330 = vperm.xlu0 %329, %v327
        %v331 = vpop.permute.xlu0 %330
        %v333 = vadd.f32 %v324, %v331
        %v334 = vadd.f32 %v325, %v331
        %v335 = vadd.f32 %v326, %v331
        %v336 = vld [vmem:[%s275] sm:$0xff]
        %v337 = vld [vmem:[%s275 + $0x8] sm:$0xf]
        %v338 = vunpack.c.l.bf16 %v336
        %v339 = vunpack.c.h.bf16 %v336
        %v340 = vunpack.c.l.bf16 %v337
        %v341 = vadd.f32 %v333, %v338
        %v342 = vadd.f32 %v334, %v339
        %v343 = vadd.f32 %v335, %v340
        %v344 = vmax.f32 %v341, 0.0
        %v345 = vmax.f32 %v342, 0.0
        %v346 = vmax.f32 %v343, 0.0
        %347 = vst [vmem:[%s312] sm:$0xff] %v344
        %348 = vst [vmem:[%s312 + $0x8] sm:$0xff] %v345
        %vm349 = vcmask 556032
        %350 = vst.msk [vmem:[%s312 + $0x10] sm:$0xff] %vm349, %v346
        %s351 = sand.u32 %s155, 1
        %s352 = scalar_lea.sflag [#allocation4], %s351
        %s353 = sand.u32 %s155, 1
        %s354 = smul.addr %s353, 24
        %s355 = scalar_lea.vmem [#allocation10], %s354
        // Predicated region
        $region53: #{residual_block_v2.5} parent=35 // pred_check
          %p356 = pneg %p165
        $region54: #{residual_block_v2.5} parent=35 // pred_check_branch
          %358 = sbr.rel (%p356) target = $region56
        $region55: #{residual_block_v2.5} parent=35 // pred_region
          %s360 = ssub.s32 384, 384
          %361 = vsyncadd %s352, %s360
          %s362 = smul.addr %s30, 3
          %s363 = smul.addr %s29, 3
          %s364 = sadd.s32 %s362, %s363
          %s365 = smul.addr %s364, 128
          %s366 = scalar_lea.hbm %s4, %s365
          %s368 = sshll.u32 %s355, 4
          %s369 = int_to_ptr.vmem [resolvable:$true] %s368
          %371 = dma.vmem_to_hbm [thread:$0]  %s369, 384, %s366, %s352
        $region56: #{residual_block_v2.5} parent=35 // pred_fallthru
          _
      $region36: #{residual_block_v2.5} parent=5 // pred_fallthru
        _
      %p372 = scmp.le.s32.totalorder 2, %s20
      // Predicated region
      $region57: #{residual_block_v2.5} parent=5 // pred_check
        %p373 = pneg %p372
      $region58: #{residual_block_v2.5} parent=5 // pred_check_branch
        %375 = sbr.rel (%p373) target = $region60
      $region59: #{residual_block_v2.5} parent=5 // pred_region
        %s376 = ssub.s32 %s20, 2
        // Predicated region
        $region61: #{residual_block_v2.5} parent=59 // pred_check
          %p377 = pneg %p171
        $region62: #{residual_block_v2.5} parent=59 // pred_check_branch
          %379 = sbr.rel (%p377) target = $region64
        $region63: #{residual_block_v2.5} parent=59 // pred_region
          %s380 = sand.u32 %s156, 1
          %s381 = scalar_lea.sflag [#allocation4], %s380
          %s382 = sand.u32 %s156, 1
          %s383 = smul.addr %s382, 24
          %s384 = scalar_lea.vmem [#allocation10], %s383
          %385 = dma.done %s381, 384
        $region64: #{residual_block_v2.5} parent=59 // pred_fallthru
          _
      $region60: #{residual_block_v2.5} parent=5 // pred_fallthru
        _
    $region6: #{residual_block_v2.5} parent=1 // loop_footer
      %s24 = sadd.s32 1, %s20
    $region7: #{residual_block_v2.5} parent=1 // loop_footer_branch
      %19 = sbr.rel target = $region3
    $region8: #{residual_block_v2.5} parent=1 // loop_exit
      _
    %386 = vsyncpa [#allocation3], 1
    %s387 = scalar_lea.sflag [#allocation3], 1
    %388 = vsyncpa %s387, 1
    %389 = vsyncpa [#allocation6], 1
    %s390 = scalar_lea.sflag [#allocation6], 1
    %391 = vsyncpa %s390, 1
    %392 = vsyncpa [#allocation9], 1
    %393 = vsyncpa [#allocation4], 1
    %s394 = scalar_lea.sflag [#allocation4], 1
    %395 = vsyncpa %s394, 1

// kernel: residual_block_v2.3
$region0: #{residual_block_v2.3}
  #allocation0 [shape = 'u32[]', space=smem, size = 0x4, offset = 0x4, fixed_abs, tag = 'smem constant byte address 0x4 - core index']
  #allocation1 [shape = 'u32[144,128]{1,0:T(1,128)}', space=vmem, size = 0x12000, scoped, tag = 'internal scratch']
  #allocation2 [shape = 'f32[8,531]{1,0:T(8,128)}', space=vmem, size = 0x5000, scoped, tag = 'scratch operand']
  %s0 = inlined_call_operand.hbm [shape: bf16[2,8,324], index: 0, kind: input, shape index: {}]
  %s1 = inlined_call_operand.hbm [shape: bf16[8,72], index: 1, kind: input, shape index: {}]
  %s2 = inlined_call_operand.hbm [shape: f32[1,384], index: 2, kind: input, shape index: {}]
  %s3 = inlined_call_operand.hbm [shape: bf16[2,8,384], index: 3, kind: output, shape index: {0}]
  %s4 = inlined_call_operand.hbm [shape: f32[2,8,1], index: 4, kind: output, shape index: {1}]
  %s5 = inlined_call_operand.hbm [shape: f32[2,8,1], index: 5, kind: output, shape index: {2}]
  %6 = xla_tuple %s3, %s4, %s5
  %s7 = sld [smem:[#allocation0]]
  $region73: #{residual_block_v2.3} parent=0
    _
  %s9 = ssub.s32 1, %s7
  %s10 = scalar_select 0, %s9, %s7
  $region1: #{residual_block_v2.3} parent=0
    #allocation3 [shape = 'u8[12288]{0}', space=vmem, size = 0x3000, scoped, tag = 'input window, operand 0']
    #allocation4 [shape = 's32[2]{0}', space=sflag, size = 0x8, scoped, tag = 'scoped memory for residual_block_v2.3']
    #allocation5 [shape = 's32[2]{0}', space=sflag, size = 0x8, scoped, tag = 'scoped memory for residual_block_v2.3']
    #allocation6 [shape = 'u8[2048]{0}', space=vmem, size = 0x800, scoped, tag = 'input window, operand 1, single buffered']
    #allocation7 [shape = 's32[1]{0}', space=sflag, size = 0x4, scoped, tag = 'scoped memory for residual_block_v2.3']
    #allocation8 [shape = 'u8[1536]{0}', space=vmem, size = 0x800, scoped, tag = 'input window, operand 2, single buffered']
    #allocation9 [shape = 'u8[12288]{0}', space=vmem, size = 0x3000, scoped, tag = 'output window, operand 0']
    #allocation10 [shape = 'u8[8192]{0}', space=vmem, size = 0x2000, scoped, tag = 'output window, operand 1']
    #allocation11 [shape = 's32[2]{0}', space=sflag, size = 0x8, scoped, tag = 'scoped memory for residual_block_v2.3']
    #allocation12 [shape = 'u8[8192]{0}', space=vmem, size = 0x2000, scoped, tag = 'output window, operand 2']
    %11 = vsyncpa [#allocation4], 0
    %s12 = scalar_lea.sflag [#allocation4], 1
    %13 = vsyncpa %s12, 0
    %14 = vsyncpa [#allocation7], 0
    %15 = vsyncpa [#allocation5], 0
    %s16 = scalar_lea.sflag [#allocation5], 1
    %17 = vsyncpa %s16, 0
    %18 = vsyncpa [#allocation11], 0
    %s19 = scalar_lea.sflag [#allocation11], 1
    %20 = vsyncpa %s19, 0
    loop: start=0, step=1, limit=4
    $region2: #{residual_block_v2.3} parent=1 // loop_pre_header
      _
    $region3: #{residual_block_v2.3} parent=1 // loop_header
      %s22 = sphi 0, %s26
      %p23 = scmp.ge.s32.totalorder %s22, 4
      %s29 = sphi 0, %s41
      %s30 = sphi 0, %s37
      %s31 = sphi 0, %s29
      %s32 = sphi 0, %s30
      %s33 = sphi 0, %s31
      %s34 = sphi 0, %s32
      %s44 = sphi 0, %s46
      %s47 = sphi 0, %s44
      %s48 = sphi 0, %s47
      %s64 = sphi 0, %s48
      %s70 = sphi 0, %s72
      %s73 = sphi 0, %s70
      %s74 = sphi 0, %s73
      %s90 = sphi 0, %s74
      %s94 = sphi 0, %s94
      %s96 = sphi 0, %s94
      %s97 = sphi 0, %s96
      %s111 = sphi 0, %s97
      %s119 = sphi 0, %s121
      %s122 = sphi 0, %s119
      %s123 = sphi 0, %s122
      %s139 = sphi 0, %s123
      %s147 = sphi 0, %s149
      %s150 = sphi 0, %s147
      %s151 = sphi 0, %s150
      %s167 = sphi 0, %s151
      %s175 = sphi 0, %s177
      %s178 = sphi 0, %s175
      %s179 = sphi 0, %s178
      %s195 = sphi 0, %s179
    $region4: #{residual_block_v2.3} parent=1 // loop_header_branch
      %25 = sbr.rel (%p23) target = $region8
    $region5: #{residual_block_v2.3} parent=1 // loop_body
      %s27 = ssub.s32 %s22, 1
      %s28 = ssub.s32 %s22, 2
      %s35 = sadd.s32 1, %s30
      %p36 = scmp.ge.s32.totalorder %s35, 1
      %s37 = scalar_select %p36, 0, %s35
      %s38 = sadd.s32 1, %s29
      %s39 = scalar_select %p36, %s38, %s29
      %p40 = scmp.ge.s32.totalorder %s39, 2
      %s41 = scalar_select %p40, 0, %s39
      %s42 = ssub.s32 %s29, %s41
      %p43 = scmp.eq.s32.totalorder %s42, 0
      %s45 = sadd.s32 %s44, 1
      %s46 = scalar_select %p43, %s44, %s45
      %p49 = pneg %p43
      %p50 = scmp.eq.s32.totalorder %s22, 1
      %p51 = por %p49, %p50
      %p52 = scmp.ne.s32.totalorder %s44, %s47
      %p53 = scmp.eq.s32.totalorder %s22, 0
      %p54 = por %p52, %p53
      %p55 = scmp.ne.s32.totalorder %s44, %s47
      %p56 = scmp.eq.s32.totalorder %s27, 1
      %p57 = por %p55, %p56
      %p58 = scmp.ne.s32.totalorder %s47, %s48
      %p59 = scmp.eq.s32.totalorder %s27, 0
      %p60 = por %p58, %p59
      %p61 = scmp.ne.s32.totalorder %s47, %s48
      %p62 = scmp.eq.s32.totalorder %s28, 1
      %p63 = por %p61, %p62
      %p65 = scmp.ne.s32.totalorder %s48, %s64
      %p66 = scmp.eq.s32.totalorder %s28, 0
      %p67 = por %p65, %p66
      %s68 = ssub.s32 %s30, %s37
      %p69 = scmp.eq.s32.totalorder %s68, 0
      %s71 = sadd.s32 %s70, 1
      %s72 = scalar_select %p69, %s70, %s71
      %p75 = pneg %p69
      %p76 = scmp.eq.s32.totalorder %s22, 1
      %p77 = por %p75, %p76
      %p78 = scmp.ne.s32.totalorder %s70, %s73
      %p79 = scmp.eq.s32.totalorder %s22, 0
      %p80 = por %p78, %p79
      %p81 = scmp.ne.s32.totalorder %s70, %s73
      %p82 = scmp.eq.s32.totalorder %s27, 1
      %p83 = por %p81, %p82
      %p84 = scmp.ne.s32.totalorder %s73, %s74
      %p85 = scmp.eq.s32.totalorder %s27, 0
      %p86 = por %p84, %p85
      %p87 = scmp.ne.s32.totalorder %s73, %s74
      %p88 = scmp.eq.s32.totalorder %s28, 1
      %p89 = por %p87, %p88
      %p91 = scmp.ne.s32.totalorder %s74, %s90
      %p92 = scmp.eq.s32.totalorder %s28, 0
      %p93 = por %p91, %p92
      %s95 = sadd.s32 %s94, 1
      %p98 = scmp.eq.s32.totalorder %s22, 1
      %p99 = scmp.ne.s32.totalorder %s94, %s96
      %p100 = scmp.eq.s32.totalorder %s22, 0
      %p101 = por %p99, %p100
      %p102 = scmp.ne.s32.totalorder %s94, %s96
      %p103 = scmp.eq.s32.totalorder %s27, 1
      %p104 = por %p102, %p103
      %p105 = scmp.ne.s32.totalorder %s96, %s97
      %p106 = scmp.eq.s32.totalorder %s27, 0
      %p107 = por %p105, %p106
      %p108 = scmp.ne.s32.totalorder %s96, %s97
      %p109 = scmp.eq.s32.totalorder %s28, 1
      %p110 = por %p108, %p109
      %p112 = scmp.ne.s32.totalorder %s97, %s111
      %p113 = scmp.eq.s32.totalorder %s28, 0
      %p114 = por %p112, %p113
      %s115 = ssub.s32 %s29, %s41
      %s116 = ssub.s32 %s30, %s37
      %s117 = sor.u32 %s115, %s116
      %p118 = scmp.eq.s32.totalorder %s117, 0
      %s120 = sadd.s32 %s119, 1
      %s121 = scalar_select %p118, %s119, %s120
      %p124 = pneg %p118
      %p125 = scmp.eq.s32.totalorder %s22, 1
      %p126 = por %p124, %p125
      %p127 = scmp.ne.s32.totalorder %s119, %s122
      %p128 = scmp.eq.s32.totalorder %s22, 0
      %p129 = por %p127, %p128
      %p130 = scmp.ne.s32.totalorder %s119, %s122
      %p131 = scmp.eq.s32.totalorder %s27, 1
      %p132 = por %p130, %p131
      %p133 = scmp.ne.s32.totalorder %s122, %s123
      %p134 = scmp.eq.s32.totalorder %s27, 0
      %p135 = por %p133, %p134
      %p136 = scmp.ne.s32.totalorder %s122, %s123
      %p137 = scmp.eq.s32.totalorder %s28, 1
      %p138 = por %p136, %p137
      %p140 = scmp.ne.s32.totalorder %s123, %s139
      %p141 = scmp.eq.s32.totalorder %s28, 0
      %p142 = por %p140, %p141
      %s143 = ssub.s32 %s29, %s41
      %s144 = ssub.s32 %s30, %s37
      %s145 = sor.u32 %s143, %s144
      %p146 = scmp.eq.s32.totalorder %s145, 0
      %s148 = sadd.s32 %s147, 1
      %s149 = scalar_select %p146, %s147, %s148
      %p152 = pneg %p146
      %p153 = scmp.eq.s32.totalorder %s22, 1
      %p154 = por %p152, %p153
      %p155 = scmp.ne.s32.totalorder %s147, %s150
      %p156 = scmp.eq.s32.totalorder %s22, 0
      %p157 = por %p155, %p156
      %p158 = scmp.ne.s32.totalorder %s147, %s150
      %p159 = scmp.eq.s32.totalorder %s27, 1
      %p160 = por %p158, %p159
      %p161 = scmp.ne.s32.totalorder %s150, %s151
      %p162 = scmp.eq.s32.totalorder %s27, 0
      %p163 = por %p161, %p162
      %p164 = scmp.ne.s32.totalorder %s150, %s151
      %p165 = scmp.eq.s32.totalorder %s28, 1
      %p166 = por %p164, %p165
      %p168 = scmp.ne.s32.totalorder %s151, %s167
      %p169 = scmp.eq.s32.totalorder %s28, 0
      %p170 = por %p168, %p169
      %s171 = ssub.s32 %s29, %s41
      %s172 = ssub.s32 %s30, %s37
      %s173 = sor.u32 %s171, %s172
      %p174 = scmp.eq.s32.totalorder %s173, 0
      %s176 = sadd.s32 %s175, 1
      %s177 = scalar_select %p174, %s175, %s176
      %p180 = pneg %p174
      %p181 = scmp.eq.s32.totalorder %s22, 1
      %p182 = por %p180, %p181
      %p183 = scmp.ne.s32.totalorder %s175, %s178
      %p184 = scmp.eq.s32.totalorder %s22, 0
      %p185 = por %p183, %p184
      %p186 = scmp.ne.s32.totalorder %s175, %s178
      %p187 = scmp.eq.s32.totalorder %s27, 1
      %p188 = por %p186, %p187
      %p189 = scmp.ne.s32.totalorder %s178, %s179
      %p190 = scmp.eq.s32.totalorder %s27, 0
      %p191 = por %p189, %p190
      %p192 = scmp.ne.s32.totalorder %s178, %s179
      %p193 = scmp.eq.s32.totalorder %s28, 1
      %p194 = por %p192, %p193
      %p196 = scmp.ne.s32.totalorder %s179, %s195
      %p197 = scmp.eq.s32.totalorder %s28, 0
      %p198 = por %p196, %p197
      %p199 = scmp.le.s32.totalorder 1, %s22
      %p200 = scmp.lt.s32.totalorder %s22, 3
      %p201 = pnand %p199, %p200
      %p202 = pneg %p201
      // Predicated region
      $region9: #{residual_block_v2.3} parent=5 // pred_check
        _
      $region10: #{residual_block_v2.3} parent=5 // pred_check_branch
        %204 = sbr.rel (%p201) target = $region12
      $region11: #{residual_block_v2.3} parent=5 // pred_region
        %s205 = ssub.s32 %s22, 1
        // Predicated region
        $region13: #{residual_block_v2.3} parent=11 // pred_check
          %p206 = pneg %p86
        $region14: #{residual_block_v2.3} parent=11 // pred_check_branch
          %208 = sbr.rel (%p206) target = $region16
        $region15: #{residual_block_v2.3} parent=11 // pred_region
          %s210 = ssub.s32 64, 64
          %211 = vsyncadd [#allocation7], %s210
          %s212 = smul.addr %s32, 64
          %s213 = scalar_lea.hbm %s1, %s212
          %s215 = sshll.u32 [#allocation6], 4
          %s216 = int_to_ptr.vmem [resolvable:$true] %s215
          %218 = dma.hbm_to_vmem [thread:$0]  %s213, 64, %s216, [#allocation7]
        $region16: #{residual_block_v2.3} parent=11 // pred_fallthru
          _
        // Predicated region
        $region17: #{residual_block_v2.3} parent=11 // pred_check
          %p219 = pneg %p107
        $region18: #{residual_block_v2.3} parent=11 // pred_check_branch
          %221 = sbr.rel (%p219) target = $region20
        $region19: #{residual_block_v2.3} parent=11 // pred_region
          %s223 = ssub.s32 48, 48
          %224 = vsyncadd [#allocation7], %s223
          %s226 = sshll.u32 [#allocation8], 4
          %s227 = int_to_ptr.vmem [resolvable:$true] %s226
          %229 = dma.hbm_to_vmem [thread:$0]  %s2, 48, %s227, [#allocation7]
        $region20: #{residual_block_v2.3} parent=11 // pred_fallthru
          _
      $region12: #{residual_block_v2.3} parent=5 // pred_fallthru
        _
      %p230 = scmp.lt.s32.totalorder %s22, 2
      // Predicated region
      $region21: #{residual_block_v2.3} parent=5 // pred_check
        %p231 = pneg %p230
      $region22: #{residual_block_v2.3} parent=5 // pred_check_branch
        %233 = sbr.rel (%p231) target = $region24
      $region23: #{residual_block_v2.3} parent=5 // pred_region
        // Predicated region
        $region25: #{residual_block_v2.3} parent=23 // pred_check
          %p234 = pneg %p54
        $region26: #{residual_block_v2.3} parent=23 // pred_check_branch
          %236 = sbr.rel (%p234) target = $region28
        $region27: #{residual_block_v2.3} parent=23 // pred_region
          %s237 = sand.u32 %s44, 1
          %s238 = scalar_lea.sflag [#allocation4], %s237
          %s239 = sand.u32 %s44, 1
          %s240 = smul.addr %s239, 12
          %s241 = scalar_lea.vmem [#allocation3], %s240
          %s243 = ssub.s32 192, 192
          %244 = vsyncadd %s238, %s243
          %s245 = smul.addr %s29, 3
          %s246 = smul.addr %s245, 64
          %s247 = scalar_lea.hbm %s0, %s246
          %s249 = sshll.u32 %s241, 4
          %s250 = int_to_ptr.vmem [resolvable:$true] %s249
          %252 = dma.hbm_to_vmem [thread:$0]  %s247, 192, %s250, %s238
        $region28: #{residual_block_v2.3} parent=23 // pred_fallthru
          _
      $region24: #{residual_block_v2.3} parent=5 // pred_fallthru
        _
      %p253 = scmp.le.s32.totalorder 1, %s22
      %p254 = scmp.lt.s32.totalorder %s22, 3
      %p255 = pnand %p253, %p254
      %p256 = pneg %p255
      // Predicated region
      $region29: #{residual_block_v2.3} parent=5 // pred_check
        _
      $region30: #{residual_block_v2.3} parent=5 // pred_check_branch
        %258 = sbr.rel (%p255) target = $region32
      $region31: #{residual_block_v2.3} parent=5 // pred_region
        %s259 = ssub.s32 %s22, 1
        %s260 = sand.u32 %s47, 1
        %s261 = scalar_lea.sflag [#allocation4], %s260
        %s262 = sand.u32 %s47, 1
        %s263 = smul.addr %s262, 12
        %s264 = scalar_lea.vmem [#allocation3], %s263
        // Predicated region
        $region33: #{residual_block_v2.3} parent=31 // pred_check
          %p265 = pneg %p60
        $region34: #{residual_block_v2.3} parent=31 // pred_check_branch
          %267 = sbr.rel (%p265) target = $region36
        $region35: #{residual_block_v2.3} parent=31 // pred_region
          %268 = dma.done %s261, 192
        $region36: #{residual_block_v2.3} parent=31 // pred_fallthru
          _
        // Predicated region
        $region37: #{residual_block_v2.3} parent=31 // pred_check
          %p269 = pneg %p86
        $region38: #{residual_block_v2.3} parent=31 // pred_check_branch
          %271 = sbr.rel (%p269) target = $region40
        $region39: #{residual_block_v2.3} parent=31 // pred_region
          %272 = dma.done [#allocation7], 64
        $region40: #{residual_block_v2.3} parent=31 // pred_fallthru
          _
        // Predicated region
        $region41: #{residual_block_v2.3} parent=31 // pred_check
          %p273 = pneg %p107
        $region42: #{residual_block_v2.3} parent=31 // pred_check_branch
          %275 = sbr.rel (%p273) target = $region44
        $region43: #{residual_block_v2.3} parent=31 // pred_region
          %276 = dma.done [#allocation7], 48
        $region44: #{residual_block_v2.3} parent=31 // pred_fallthru
          _
        %s277 = sand.u32 %s47, 1
        %s278 = scalar_lea.sflag [#allocation4], %s277
        %s279 = sand.u32 %s47, 1
        %s280 = smul.addr %s279, 12
        %s281 = scalar_lea.vmem [#allocation3], %s280
        %p282 = pneg %p60
        %p283 = pneg %p57
        %p284 = pneg %p86
        %p285 = pneg %p83
        %p286 = pneg %p107
        %p287 = pneg %p104
        %p288 = pneg %p135
        %p289 = pneg %p132
        %s290 = sand.u32 %s122, 1
        %s291 = scalar_lea.sflag [#allocation5], %s290
        %s292 = sand.u32 %s122, 1
        %s293 = smul.addr %s292, 12
        %s294 = scalar_lea.vmem [#allocation9], %s293
        %p295 = pneg %p163
        %p296 = pneg %p160
        %s297 = sand.u32 %s27, 1
        %s298 = scalar_lea.sflag [#allocation11], %s297
        %s299 = sand.u32 %s150, 1
        %s300 = smul.addr %s299, 8
        %s301 = scalar_lea.vmem [#allocation10], %s300
        %p302 = pneg %p191
        %p303 = pneg %p188
        %s304 = sand.u32 %s27, 1
        %s305 = scalar_lea.sflag [#allocation11], %s304
        %s306 = sand.u32 %s178, 1
        %s307 = smul.addr %s306, 8
        %s308 = scalar_lea.vmem [#allocation12], %s307
        %310 = vst [vmem:[#allocation2] sm:$0xff] 0.0
        %vm311 = vcmask 1048096
        %312 = vst.msk [vmem:[#allocation2 + $0x18] sm:$0xff] %vm311, 0.0
        %vm313 = vcmask 154624
        %314 = vst.msk [vmem:[#allocation2 + $0x20] sm:$0xff] %vm313, 0.0
        %v315 = vld [vmem:[%s264] sm:$0xff]
        %v316 = vld [vmem:[%s264 + $0x8] sm:$0xf]
        %v317 = vunpack.c.l.bf16 %v315
        %v318 = vunpack.c.h.bf16 %v315
        %v319 = vunpack.c.l.bf16 %v316
        %320 = vst [vmem:[#allocation2 + $0x8] sm:$0xff] %v317
        %321 = vst [vmem:[#allocation2 + $0x10] sm:$0xff] %v318
        %vm322 = vcmask 556032
        %323 = vst.msk [vmem:[#allocation2 + $0x18] sm:$0xff] %vm322, %v319
        %v324 = vld [vmem:[#allocation2] sm:$0xff]
        %v325 = vld [vmem:[#allocation2 + $0x8] sm:$0xff]
        %v326 = vld [vmem:[#allocation2 + $0x10] sm:$0xff]
        %v327 = vld [vmem:[#allocation2 + $0x18] sm:$0xff]
        %v328 = vld [vmem:[#allocation2 + $0x20] sm:$0xff]
        %v329 = vld [vmem:[#allocation6] sm:$0xf]
        %334 = vrot.lane.b32.xlu0 %v324, 127
        %v335 = vpop.permute.xlu0 %334
        %336 = vrot.lane.b32.xlu0 %v325, 127
        %v337 = vpop.permute.xlu0 %336
        %338 = vrot.lane.b32.xlu0 %v326, 127
        %v339 = vpop.permute.xlu0 %338
        %340 = vrot.lane.b32.xlu0 %v327, 127
        %v341 = vpop.permute.xlu0 %340
        %vm342 = vcmask 1039360
        %v343 = vsel %vm342, %v335, %v337
        %v344 = vsel %vm342, %v337, %v339
        %v345 = vsel %vm342, %v339, %v341
        %350 = vrot.lane.b32.xlu0 %v324, 126
        %v351 = vpop.permute.xlu0 %350
        %352 = vrot.lane.b32.xlu0 %v325, 126
        %v353 = vpop.permute.xlu0 %352
        %354 = vrot.lane.b32.xlu0 %v326, 126
        %v355 = vpop.permute.xlu0 %354
        %356 = vrot.lane.b32.xlu0 %v327, 126
        %v357 = vpop.permute.xlu0 %356
        %vm358 = vcmask 1031168
        %v359 = vsel %vm358, %v351, %v353
        %v360 = vsel %vm358, %v353, %v355
        %v361 = vsel %vm358, %v355, %v357
        %366 = vrot.lane.b32.xlu0 %v324, 110
        %v367 = vpop.permute.xlu0 %366
        %368 = vrot.lane.b32.xlu0 %v325, 110
        %v369 = vpop.permute.xlu0 %368
        %370 = vrot.lane.b32.xlu0 %v326, 110
        %v371 = vpop.permute.xlu0 %370
        %372 = vrot.lane.b32.xlu0 %v327, 110
        %v373 = vpop.permute.xlu0 %372
        %vm374 = vcmask 900096
        %v375 = vsel %vm374, %v367, %v369
        %v376 = vsel %vm374, %v369, %v371
        %v377 = vsel %vm374, %v371, %v373
        %382 = vrot.lane.b32.xlu0 %v325, 109
        %v383 = vpop.permute.xlu0 %382
        %384 = vrot.lane.b32.xlu0 %v326, 109
        %v385 = vpop.permute.xlu0 %384
        %386 = vrot.lane.b32.xlu0 %v327, 109
        %v387 = vpop.permute.xlu0 %386
        %vm388 = vcmask 891904
        %v389 = vsel %vm388, %v383, %v385
        %v390 = vsel %vm388, %v385, %v387
        %396 = vrot.lane.b32.xlu0 %v325, 108
        %v397 = vpop.permute.xlu0 %396
        %398 = vrot.lane.b32.xlu0 %v326, 108
        %v399 = vpop.permute.xlu0 %398
        %400 = vrot.lane.b32.xlu0 %v327, 108
        %v401 = vpop.permute.xlu0 %400
        %402 = vrot.lane.b32.xlu0 %v328, 108
        %v403 = vpop.permute.xlu0 %402
        %vm404 = vcmask 883712
        %v405 = vsel %vm404, %v397, %v399
        %v406 = vsel %vm404, %v399, %v401
        %v407 = vsel %vm404, %v401, %v403
        %412 = vrot.lane.b32.xlu0 %v325, 92
        %v413 = vpop.permute.xlu0 %412
        %414 = vrot.lane.b32.xlu0 %v326, 92
        %v415 = vpop.permute.xlu0 %414
        %416 = vrot.lane.b32.xlu0 %v327, 92
        %v417 = vpop.permute.xlu0 %416
        %418 = vrot.lane.b32.xlu0 %v328, 92
        %v419 = vpop.permute.xlu0 %418
        %vm420 = vcmask 752640
        %v421 = vsel %vm420, %v413, %v415
        %v422 = vsel %vm420, %v415, %v417
        %v423 = vsel %vm420, %v417, %v419
        %428 = vrot.lane.b32.xlu0 %v325, 91
        %v429 = vpop.permute.xlu0 %428
        %430 = vrot.lane.b32.xlu0 %v326, 91
        %v431 = vpop.permute.xlu0 %430
        %432 = vrot.lane.b32.xlu0 %v327, 91
        %v433 = vpop.permute.xlu0 %432
        %434 = vrot.lane.b32.xlu0 %v328, 91
        %v435 = vpop.permute.xlu0 %434
        %vm436 = vcmask 744448
        %v437 = vsel %vm436, %v429, %v431
        %v438 = vsel %vm436, %v431, %v433
        %v439 = vsel %vm436, %v433, %v435
        %444 = vrot.lane.b32.xlu0 %v325, 90
        %v445 = vpop.permute.xlu0 %444
        %446 = vrot.lane.b32.xlu0 %v326, 90
        %v447 = vpop.permute.xlu0 %446
        %448 = vrot.lane.b32.xlu0 %v327, 90
        %v449 = vpop.permute.xlu0 %448
        %450 = vrot.lane.b32.xlu0 %v328, 90
        %v451 = vpop.permute.xlu0 %450
        %vm452 = vcmask 736256
        %v453 = vsel %vm452, %v445, %v447
        %v454 = vsel %vm452, %v447, %v449
        %v455 = vsel %vm452, %v449, %v451
        %v460 = vpack.c.bf16 %v343, %v324
        %v461 = vpack.c.bf16 %v344, %v325
        %v462 = vpack.c.bf16 %v345, %v326
        %v463 = vpack.c.bf16 %v341, %v327
        %v464 = vpack.c.bf16 %v375, %v359
        %v465 = vpack.c.bf16 %v376, %v360
        %v466 = vpack.c.bf16 %v377, %v361
        %v467 = vpack.c.bf16 %v373, %v357
        %v468 = vpack.c.bf16 %v397, %v383
        %v469 = vpack.c.bf16 %v405, %v389
        %v470 = vpack.c.bf16 %v406, %v390
        %v471 = vpack.c.bf16 %v407, %v387
        %v472 = vpack.c.bf16 %v429, %v413
        %v473 = vpack.c.bf16 %v437, %v421
        %v474 = vpack.c.bf16 %v438, %v422
        %v475 = vpack.c.bf16 %v439, %v423
        %v476 = vpack.c.bf16 %v445, %v445
        %v477 = vpack.c.bf16 %v453, %v453
        %v478 = vpack.c.bf16 %v454, %v454
        %v479 = vpack.c.bf16 %v455, %v455
        %500 = vrot.lane.b32.xlu0 %v460, 19
        %v501 = vpop.permute.xlu0 %500
        %502 = vrot.lane.b32.xlu0 %v461, 19
        %v503 = vpop.permute.xlu0 %502
        %504 = vrot.lane.b32.xlu0 %v462, 19
        %v505 = vpop.permute.xlu0 %504
        %506 = vrot.lane.b32.xlu0 %v463, 19
        %v507 = vpop.permute.xlu0 %506
        %508 = vrot.lane.b32.xlu0 %v464, 19
        %v509 = vpop.permute.xlu0 %508
        %510 = vrot.lane.b32.xlu0 %v465, 19
        %v511 = vpop.permute.xlu0 %510
        %512 = vrot.lane.b32.xlu0 %v466, 19
        %v513 = vpop.permute.xlu0 %512
        %514 = vrot.lane.b32.xlu0 %v467, 19
        %v515 = vpop.permute.xlu0 %514
        %516 = vrot.lane.b32.xlu0 %v468, 19
        %v517 = vpop.permute.xlu0 %516
        %518 = vrot.lane.b32.xlu0 %v469, 19
        %v519 = vpop.permute.xlu0 %518
        %520 = vrot.lane.b32.xlu0 %v470, 19
        %v521 = vpop.permute.xlu0 %520
        %522 = vrot.lane.b32.xlu0 %v471, 19
        %v523 = vpop.permute.xlu0 %522
        %524 = vrot.lane.b32.xlu0 %v472, 19
        %v525 = vpop.permute.xlu0 %524
        %526 = vrot.lane.b32.xlu0 %v473, 19
        %v527 = vpop.permute.xlu0 %526
        %528 = vrot.lane.b32.xlu0 %v474, 19
        %v529 = vpop.permute.xlu0 %528
        %530 = vrot.lane.b32.xlu0 %v475, 19
        %v531 = vpop.permute.xlu0 %530
        %532 = vrot.lane.b32.xlu0 %v476, 19
        %v533 = vpop.permute.xlu0 %532
        %534 = vrot.lane.b32.xlu0 %v477, 19
        %v535 = vpop.permute.xlu0 %534
        %536 = vrot.lane.b32.xlu0 %v478, 19
        %v537 = vpop.permute.xlu0 %536
        %538 = vrot.lane.b32.xlu0 %v479, 19
        %v539 = vpop.permute.xlu0 %538
        %vm540 = vcmask 154624
        %v541 = vsel %vm540, %v501, %v503
        %v542 = vsel %vm540, %v503, %v505
        %v543 = vsel %vm540, %v505, %v507
        %v544 = vsel %vm540, %v509, %v511
        %v545 = vsel %vm540, %v511, %v513
        %v546 = vsel %vm540, %v513, %v515
        %v547 = vsel %vm540, %v517, %v519
        %v548 = vsel %vm540, %v519, %v521
        %v549 = vsel %vm540, %v521, %v523
        %v550 = vsel %vm540, %v525, %v527
        %v551 = vsel %vm540, %v527, %v529
        %v552 = vsel %vm540, %v529, %v531
        %v553 = vsel %vm540, %v533, %v535
        %v554 = vsel %vm540, %v535, %v537
        %v555 = vsel %vm540, %v537, %v539
        %vm568 = vcmask 588800
        %v570 = vsel %vm568, %v329, 0
        %vm572 = vcmask 1043456
        %v574 = vsel %vm572, %v553, 0
        %v577 = vsel %vm572, %v554, 0
        %v580 = vsel %vm572, %v555, 0
        %582 = vmatprep.subr.bf16.mxu0 %v542
        %583 = vmatpush1.bf16.msra.mxu0 %v541
        %584 = vmatprep.subr.bf16.mxu0 %v545
        %585 = vmatpush1.bf16.msra.mxu0 %v544
        %586 = vmatprep.subr.bf16.mxu0 %v548
        %587 = vmatpush1.bf16.msra.mxu0 %v547
        %588 = vmatprep.subr.bf16.mxu0 %v551
        %589 = vmatpush1.bf16.msra.mxu0 %v550
        %590 = vmatprep.subr.bf16.mxu0 %v577
        %591 = vmatpush1.bf16.msra.mxu0 %v574
        %592 = vmatprep.subr.bf16.mxu0 0
        %593 = vmatpush1.bf16.msra.mxu0 0
        %594 = vmatprep.subr.bf16.mxu0 0
        %595 = vmatpush1.bf16.msra.mxu0 0
        %596 = vmatprep.subr.bf16.mxu0 0
        %597 = vmatpush1.bf16.msra.mxu0 0
        %598 = vmatprep.subr.bf16.mxu0 0
        %599 = vmatpush1.bf16.msra.mxu0 0
        %600 = vmatprep.subr.bf16.mxu0 0
        %601 = vmatpush1.bf16.msra.mxu0 0
        %602 = vmatprep.subr.bf16.mxu0 0
        %603 = vmatpush1.bf16.msra.mxu0 0
        %604 = vmatprep.subr.bf16.mxu0 0
        %605 = vmatpush1.bf16.msra.mxu0 0
        %606 = vmatprep.subr.bf16.mxu0 0
        %607 = vmatpush1.bf16.msra.mxu0 0
        %608 = vmatprep.subr.bf16.mxu0 0
        %609 = vmatpush1.bf16.msra.mxu0 0
        %610 = vmatprep.subr.bf16.mxu0 0
        %611 = vmatpush1.bf16.msra.mxu0 0
        %612 = vmatprep.subr.bf16.mxu0 0
        %613 = vmatpush1.bf16.msra.mxu0 0
        %614 = vmatprep.mubr.bf16.mxu0 0
        %615 = vmatmul.mubr.bf16.gmra.mrb[0].mxu0 %v570
        %v616 = vpop.f32.mrb[0].mxu0
        %v617 = vadd.f32 0.0, %v616
        %v618 = vpop.f32.mrb[0].mxu0
        %v619 = vadd.f32 0.0, %v618
        %v620 = vpop.f32.mrb[0].mxu0
        %v621 = vpop.f32.mrb[0].mxu0
        %622 = vdwg.mxu0
        %623 = vmatprep.subr.bf16.mxu0 0
        %624 = vmatpush1.bf16.msra.mxu0 %v543
        %625 = vmatprep.subr.bf16.mxu0 0
        %626 = vmatpush1.bf16.msra.mxu0 %v546
        %627 = vmatprep.subr.bf16.mxu0 0
        %628 = vmatpush1.bf16.msra.mxu0 %v549
        %629 = vmatprep.subr.bf16.mxu0 0
        %630 = vmatpush1.bf16.msra.mxu0 %v552
        %631 = vmatprep.subr.bf16.mxu0 0
        %632 = vmatpush1.bf16.msra.mxu0 %v580
        %633 = vmatprep.subr.bf16.mxu0 0
        %634 = vmatpush1.bf16.msra.mxu0 0
        %635 = vmatprep.subr.bf16.mxu0 0
        %636 = vmatpush1.bf16.msra.mxu0 0
        %637 = vmatprep.subr.bf16.mxu0 0
        %638 = vmatpush1.bf16.msra.mxu0 0
        %639 = vmatprep.subr.bf16.mxu0 0
        %640 = vmatpush1.bf16.msra.mxu0 0
        %641 = vmatprep.subr.bf16.mxu0 0
        %642 = vmatpush1.bf16.msra.mxu0 0
        %643 = vmatprep.subr.bf16.mxu0 0
        %644 = vmatpush1.bf16.msra.mxu0 0
        %645 = vmatprep.subr.bf16.mxu0 0
        %646 = vmatpush1.bf16.msra.mxu0 0
        %647 = vmatprep.subr.bf16.mxu0 0
        %648 = vmatpush1.bf16.msra.mxu0 0
        %649 = vmatprep.subr.bf16.mxu0 0
        %650 = vmatpush1.bf16.msra.mxu0 0
        %651 = vmatprep.subr.bf16.mxu0 0
        %652 = vmatpush1.bf16.msra.mxu0 0
        %653 = vmatprep.subr.bf16.mxu0 0
        %654 = vmatpush1.bf16.msra.mxu0 0
        %655 = vmatprep.mubr.bf16.mxu0 0
        %656 = vmatmul.mubr.bf16.gmra.mrb[0].mxu0 %v570
        %v657 = vpop.f32.mrb[0].mxu0
        %v658 = vadd.f32 0.0, %v657
        %v659 = vpop.f32.mrb[0].mxu0
        %v660 = vpop.f32.mrb[0].mxu0
        %v661 = vpop.f32.mrb[0].mxu0
        %662 = vdwg.mxu0
        %v663 = vld [vmem:[#allocation8] sm:$0x7]
        %v665 = vlaneseq
        %v666 = vshrl.u32 %v665, 7
        %v667 = vsub.s32 0, %v666
        %v668 = vrot.slane %v663, %v667
        %v669 = vlaneseq
        %v670 = vshrl.u32 %v669, 7
        %v671 = vsub.s32 1, %v670
        %v672 = vrot.slane %v663, %v671
        %v673 = vlaneseq
        %v674 = vshrl.u32 %v673, 7
        %v675 = vsub.s32 2, %v674
        %v676 = vrot.slane %v663, %v675
        %v680 = vmul.f32 %v617, %v668
        %v681 = vmul.f32 %v619, %v672
        %v682 = vmul.f32 %v658, %v676
        %v683 = vadd.f32 %v680, %v681
        %v684 = vadd.f32 %v683, %v682
        %685 = vadd.xlane.f32.xlu0 %v684
        %v686 = vpop.xlane.xlu0 %685
        %v687 = vmul.f32 %v686, 0.00390625
        %v688 = vsub.f32 %v617, %v687
        %v689 = vsub.f32 %v619, %v687
        %v690 = vsub.f32 %v658, %v687
        %v691 = vmul.f32 %v688, %v668
        %v692 = vmul.f32 %v689, %v672
        %v693 = vmul.f32 %v690, %v676
        %v694 = vmul.f32 %v691, %v691
        %v695 = vmul.f32 %v692, %v692
        %v696 = vmul.f32 %v693, %v693
        %v697 = vadd.f32 %v694, %v695
        %v698 = vadd.f32 %v697, %v696
        %699 = vadd.xlane.f32.xlu0 %v698
        %v700 = vpop.xlane.xlu0 %699
        %v701 = vpack.c.bf16 %v617, %v617
        %v702 = vpack.c.bf16 %v619, %v619
        %v703 = vpack.c.bf16 %v658, %v658
        %v707 = vunpack.c.l.b16 %v701
        %v708 = vunpack.c.l.b16 %v702
        %v709 = vunpack.c.l.b16 %v703
        %v710 = vpack.c.b16 %v708, %v707
        %v711 = vpack.c.b16 %v709, %v709
        %714 = vst [vmem:[%s294] sm:$0xff] %v710
        %715 = vst [vmem:[%s294 + $0x8] sm:$0xf] %v711
        %vm716 = vcmask 7168
        %717 = vst.msk [vmem:[%s301] sm:$0xff] %vm716, %v687
        %718 = vst.msk [vmem:[%s308] sm:$0xff] %vm716, %v700
        %s719 = sand.u32 %s122, 1
        %s720 = scalar_lea.sflag [#allocation5], %s719
        %s721 = sand.u32 %s122, 1
        %s722 = smul.addr %s721, 12
        %s723 = scalar_lea.vmem [#allocation9], %s722
        %s724 = sand.u32 %s27, 1
        %s725 = scalar_lea.sflag [#allocation11], %s724
        %s726 = sand.u32 %s150, 1
        %s727 = smul.addr %s726, 8
        %s728 = scalar_lea.vmem [#allocation10], %s727
        %s729 = sand.u32 %s27, 1
        %s730 = scalar_lea.sflag [#allocation11], %s729
        %s731 = sand.u32 %s178, 1
        %s732 = smul.addr %s731, 8
        %s733 = scalar_lea.vmem [#allocation12], %s732
        // Predicated region
        $region45: #{residual_block_v2.3} parent=31 // pred_check
          %p734 = pneg %p132
        $region46: #{residual_block_v2.3} parent=31 // pred_check_branch
          %736 = sbr.rel (%p734) target = $region48
        $region47: #{residual_block_v2.3} parent=31 // pred_region
          %s738 = ssub.s32 192, 192
          %739 = vsyncadd %s720, %s738
          %s740 = smul.addr %s32, 3
          %s741 = smul.addr %s31, 3
          %s742 = sadd.s32 %s740, %s741
          %s743 = smul.addr %s742, 64
          %s744 = scalar_lea.hbm %s3, %s743
          %s746 = sshll.u32 %s723, 4
          %s747 = int_to_ptr.vmem [resolvable:$true] %s746
          %749 = dma.vmem_to_hbm [thread:$0]  %s747, 192, %s744, %s720
        $region48: #{residual_block_v2.3} parent=31 // pred_fallthru
          _
        // Predicated region
        $region49: #{residual_block_v2.3} parent=31 // pred_check
          %p750 = pneg %p160
        $region50: #{residual_block_v2.3} parent=31 // pred_check_branch
          %752 = sbr.rel (%p750) target = $region52
        $region51: #{residual_block_v2.3} parent=31 // pred_region
          %s754 = ssub.s32 128, 128
          %755 = vsyncadd %s725, %s754
          %s756 = sadd.s32 %s32, %s31
          %s757 = smul.addr %s756, 128
          %s758 = scalar_lea.hbm %s4, %s757
          %s760 = sshll.u32 %s728, 4
          %s761 = int_to_ptr.vmem [resolvable:$true] %s760
          %763 = dma.vmem_to_hbm [thread:$0]  %s761, 128, %s758, %s725
        $region52: #{residual_block_v2.3} parent=31 // pred_fallthru
          _
        // Predicated region
        $region53: #{residual_block_v2.3} parent=31 // pred_check
          %p764 = pneg %p188
        $region54: #{residual_block_v2.3} parent=31 // pred_check_branch
          %766 = sbr.rel (%p764) target = $region56
        $region55: #{residual_block_v2.3} parent=31 // pred_region
          %s768 = ssub.s32 128, 128
          %769 = vsyncadd %s730, %s768
          %s770 = sadd.s32 %s32, %s31
          %s771 = smul.addr %s770, 128
          %s772 = scalar_lea.hbm %s5, %s771
          %s774 = sshll.u32 %s733, 4
          %s775 = int_to_ptr.vmem [resolvable:$true] %s774
          %777 = dma.vmem_to_hbm [thread:$0]  %s775, 128, %s772, %s730
        $region56: #{residual_block_v2.3} parent=31 // pred_fallthru
          _
      $region32: #{residual_block_v2.3} parent=5 // pred_fallthru
        _
      %p778 = scmp.le.s32.totalorder 2, %s22
      // Predicated region
      $region57: #{residual_block_v2.3} parent=5 // pred_check
        %p779 = pneg %p778
      $region58: #{residual_block_v2.3} parent=5 // pred_check_branch
        %781 = sbr.rel (%p779) target = $region60
      $region59: #{residual_block_v2.3} parent=5 // pred_region
        %s782 = ssub.s32 %s22, 2
        // Predicated region
        $region61: #{residual_block_v2.3} parent=59 // pred_check
          %p783 = pneg %p138
        $region62: #{residual_block_v2.3} parent=59 // pred_check_branch
          %785 = sbr.rel (%p783) target = $region64
        $region63: #{residual_block_v2.3} parent=59 // pred_region
          %s786 = sand.u32 %s123, 1
          %s787 = scalar_lea.sflag [#allocation5], %s786
          %s788 = sand.u32 %s123, 1
          %s789 = smul.addr %s788, 12
          %s790 = scalar_lea.vmem [#allocation9], %s789
          %791 = dma.done %s787, 192
        $region64: #{residual_block_v2.3} parent=59 // pred_fallthru
          _
        // Predicated region
        $region65: #{residual_block_v2.3} parent=59 // pred_check
          %p792 = pneg %p166
        $region66: #{residual_block_v2.3} parent=59 // pred_check_branch
          %794 = sbr.rel (%p792) target = $region68
        $region67: #{residual_block_v2.3} parent=59 // pred_region
          %s795 = sand.u32 %s28, 1
          %s796 = scalar_lea.sflag [#allocation11], %s795
          %s797 = sand.u32 %s151, 1
          %s798 = smul.addr %s797, 8
          %s799 = scalar_lea.vmem [#allocation10], %s798
          %800 = dma.done %s796, 128
        $region68: #{residual_block_v2.3} parent=59 // pred_fallthru
          _
        // Predicated region
        $region69: #{residual_block_v2.3} parent=59 // pred_check
          %p801 = pneg %p194
        $region70: #{residual_block_v2.3} parent=59 // pred_check_branch
          %803 = sbr.rel (%p801) target = $region72
        $region71: #{residual_block_v2.3} parent=59 // pred_region
          %s804 = sand.u32 %s28, 1
          %s805 = scalar_lea.sflag [#allocation11], %s804
          %s806 = sand.u32 %s179, 1
          %s807 = smul.addr %s806, 8
          %s808 = scalar_lea.vmem [#allocation12], %s807
          %809 = dma.done %s805, 128
        $region72: #{residual_block_v2.3} parent=59 // pred_fallthru
          _
      $region60: #{residual_block_v2.3} parent=5 // pred_fallthru
        _
    $region6: #{residual_block_v2.3} parent=1 // loop_footer
      %s26 = sadd.s32 1, %s22
    $region7: #{residual_block_v2.3} parent=1 // loop_footer_branch
      %21 = sbr.rel target = $region3
    $region8: #{residual_block_v2.3} parent=1 // loop_exit
      _
    %810 = vsyncpa [#allocation4], 1
    %s811 = scalar_lea.sflag [#allocation4], 1
    %812 = vsyncpa %s811, 1
    %813 = vsyncpa [#allocation7], 1
    %814 = vsyncpa [#allocation5], 1
    %s815 = scalar_lea.sflag [#allocation5], 1
    %816 = vsyncpa %s815, 1
    %817 = vsyncpa [#allocation11], 1
    %s818 = scalar_lea.sflag [#allocation11], 1
    %819 = vsyncpa %s818, 1

// kernel: residual_block_v2.4
$region0: #{residual_block_v2.4}
  #allocation0 [shape = 'u32[]', space=smem, size = 0x4, offset = 0x4, fixed_abs, tag = 'smem constant byte address 0x4 - core index']
  #allocation1 [shape = 'u32[144,128]{1,0:T(1,128)}', space=vmem, size = 0x12000, scoped, tag = 'internal scratch']
  #allocation2 [shape = 'f32[8,531]{1,0:T(8,128)}', space=vmem, size = 0x5000, scoped, tag = 'scratch operand']
  %s0 = inlined_call_operand.hbm [shape: bf16[2,8,384], index: 0, kind: input, shape index: {}]
  %s1 = inlined_call_operand.hbm [shape: bf16[8,72], index: 1, kind: input, shape index: {}]
  %s2 = inlined_call_operand.hbm [shape: f32[8,1], index: 2, kind: input, shape index: {}]
  %s3 = inlined_call_operand.hbm [shape: f32[8,1], index: 3, kind: input, shape index: {}]
  %s4 = inlined_call_operand.hbm [shape: f32[1,384], index: 4, kind: input, shape index: {}]
  %s5 = inlined_call_operand.hbm [shape: bf16[2,8,384], index: 5, kind: output, shape index: {0}]
  %s6 = inlined_call_operand.hbm [shape: f32[2,8,1], index: 6, kind: output, shape index: {1}]
  %s7 = inlined_call_operand.hbm [shape: f32[2,8,1], index: 7, kind: output, shape index: {2}]
  %8 = xla_tuple %s5, %s6, %s7
  %s9 = sld [smem:[#allocation0]]
  $region89: #{residual_block_v2.4} parent=0
    _
  %s11 = ssub.s32 1, %s9
  %s12 = scalar_select 0, %s11, %s9
  $region1: #{residual_block_v2.4} parent=0
    #allocation3 [shape = 'u8[12288]{0}', space=vmem, size = 0x3000, scoped, tag = 'input window, operand 0']
    #allocation4 [shape = 's32[2]{0}', space=sflag, size = 0x8, scoped, tag = 'scoped memory for residual_block_v2.4']
    #allocation5 [shape = 's32[2]{0}', space=sflag, size = 0x8, scoped, tag = 'scoped memory for residual_block_v2.4']
    #allocation6 [shape = 'u8[2048]{0}', space=vmem, size = 0x800, scoped, tag = 'input window, operand 1, single buffered']
    #allocation7 [shape = 's32[1]{0}', space=sflag, size = 0x4, scoped, tag = 'scoped memory for residual_block_v2.4']
    #allocation8 [shape = 'u8[4096]{0}', space=vmem, size = 0x1000, scoped, tag = 'input window, operand 2, single buffered']
    #allocation9 [shape = 'u8[4096]{0}', space=vmem, size = 0x1000, scoped, tag = 'input window, operand 3, single buffered']
    #allocation10 [shape = 's32[1]{0}', space=sflag, size = 0x4, scoped, tag = 'scoped memory for residual_block_v2.4']
    #allocation11 [shape = 'u8[1536]{0}', space=vmem, size = 0x800, scoped, tag = 'input window, operand 4, single buffered']
    #allocation12 [shape = 'u8[12288]{0}', space=vmem, size = 0x3000, scoped, tag = 'output window, operand 0']
    #allocation13 [shape = 'u8[8192]{0}', space=vmem, size = 0x2000, scoped, tag = 'output window, operand 1']
    #allocation14 [shape = 's32[2]{0}', space=sflag, size = 0x8, scoped, tag = 'scoped memory for residual_block_v2.4']
    #allocation15 [shape = 'u8[8192]{0}', space=vmem, size = 0x2000, scoped, tag = 'output window, operand 2']
    %13 = vsyncpa [#allocation4], 0
    %s14 = scalar_lea.sflag [#allocation4], 1
    %15 = vsyncpa %s14, 0
    %16 = vsyncpa [#allocation7], 0
    %17 = vsyncpa [#allocation10], 0
    %18 = vsyncpa [#allocation5], 0
    %s19 = scalar_lea.sflag [#allocation5], 1
    %20 = vsyncpa %s19, 0
    %21 = vsyncpa [#allocation14], 0
    %s22 = scalar_lea.sflag [#allocation14], 1
    %23 = vsyncpa %s22, 0
    loop: start=0, step=1, limit=4
    $region2: #{residual_block_v2.4} parent=1 // loop_pre_header
      _
    $region3: #{residual_block_v2.4} parent=1 // loop_header
      %s25 = sphi 0, %s29
      %p26 = scmp.ge.s32.totalorder %s25, 4
      %s32 = sphi 0, %s44
      %s33 = sphi 0, %s40
      %s34 = sphi 0, %s32
      %s35 = sphi 0, %s33
      %s36 = sphi 0, %s34
      %s37 = sphi 0, %s35
      %s47 = sphi 0, %s49
      %s50 = sphi 0, %s47
      %s51 = sphi 0, %s50
      %s67 = sphi 0, %s51
      %s73 = sphi 0, %s75
      %s76 = sphi 0, %s73
      %s77 = sphi 0, %s76
      %s93 = sphi 0, %s77
      %s97 = sphi 0, %s97
      %s99 = sphi 0, %s97
      %s100 = sphi 0, %s99
      %s114 = sphi 0, %s100
      %s118 = sphi 0, %s118
      %s120 = sphi 0, %s118
      %s121 = sphi 0, %s120
      %s135 = sphi 0, %s121
      %s139 = sphi 0, %s139
      %s141 = sphi 0, %s139
      %s142 = sphi 0, %s141
      %s156 = sphi 0, %s142
      %s164 = sphi 0, %s166
      %s167 = sphi 0, %s164
      %s168 = sphi 0, %s167
      %s184 = sphi 0, %s168
      %s192 = sphi 0, %s194
      %s195 = sphi 0, %s192
      %s196 = sphi 0, %s195
      %s212 = sphi 0, %s196
      %s220 = sphi 0, %s222
      %s223 = sphi 0, %s220
      %s224 = sphi 0, %s223
      %s240 = sphi 0, %s224
    $region4: #{residual_block_v2.4} parent=1 // loop_header_branch
      %28 = sbr.rel (%p26) target = $region8
    $region5: #{residual_block_v2.4} parent=1 // loop_body
      %s30 = ssub.s32 %s25, 1
      %s31 = ssub.s32 %s25, 2
      %s38 = sadd.s32 1, %s33
      %p39 = scmp.ge.s32.totalorder %s38, 1
      %s40 = scalar_select %p39, 0, %s38
      %s41 = sadd.s32 1, %s32
      %s42 = scalar_select %p39, %s41, %s32
      %p43 = scmp.ge.s32.totalorder %s42, 2
      %s44 = scalar_select %p43, 0, %s42
      %s45 = ssub.s32 %s32, %s44
      %p46 = scmp.eq.s32.totalorder %s45, 0
      %s48 = sadd.s32 %s47, 1
      %s49 = scalar_select %p46, %s47, %s48
      %p52 = pneg %p46
      %p53 = scmp.eq.s32.totalorder %s25, 1
      %p54 = por %p52, %p53
      %p55 = scmp.ne.s32.totalorder %s47, %s50
      %p56 = scmp.eq.s32.totalorder %s25, 0
      %p57 = por %p55, %p56
      %p58 = scmp.ne.s32.totalorder %s47, %s50
      %p59 = scmp.eq.s32.totalorder %s30, 1
      %p60 = por %p58, %p59
      %p61 = scmp.ne.s32.totalorder %s50, %s51
      %p62 = scmp.eq.s32.totalorder %s30, 0
      %p63 = por %p61, %p62
      %p64 = scmp.ne.s32.totalorder %s50, %s51
      %p65 = scmp.eq.s32.totalorder %s31, 1
      %p66 = por %p64, %p65
      %p68 = scmp.ne.s32.totalorder %s51, %s67
      %p69 = scmp.eq.s32.totalorder %s31, 0
      %p70 = por %p68, %p69
      %s71 = ssub.s32 %s33, %s40
      %p72 = scmp.eq.s32.totalorder %s71, 0
      %s74 = sadd.s32 %s73, 1
      %s75 = scalar_select %p72, %s73, %s74
      %p78 = pneg %p72
      %p79 = scmp.eq.s32.totalorder %s25, 1
      %p80 = por %p78, %p79
      %p81 = scmp.ne.s32.totalorder %s73, %s76
      %p82 = scmp.eq.s32.totalorder %s25, 0
      %p83 = por %p81, %p82
      %p84 = scmp.ne.s32.totalorder %s73, %s76
      %p85 = scmp.eq.s32.totalorder %s30, 1
      %p86 = por %p84, %p85
      %p87 = scmp.ne.s32.totalorder %s76, %s77
      %p88 = scmp.eq.s32.totalorder %s30, 0
      %p89 = por %p87, %p88
      %p90 = scmp.ne.s32.totalorder %s76, %s77
      %p91 = scmp.eq.s32.totalorder %s31, 1
      %p92 = por %p90, %p91
      %p94 = scmp.ne.s32.totalorder %s77, %s93
      %p95 = scmp.eq.s32.totalorder %s31, 0
      %p96 = por %p94, %p95
      %s98 = sadd.s32 %s97, 1
      %p101 = scmp.eq.s32.totalorder %s25, 1
      %p102 = scmp.ne.s32.totalorder %s97, %s99
      %p103 = scmp.eq.s32.totalorder %s25, 0
      %p104 = por %p102, %p103
      %p105 = scmp.ne.s32.totalorder %s97, %s99
      %p106 = scmp.eq.s32.totalorder %s30, 1
      %p107 = por %p105, %p106
      %p108 = scmp.ne.s32.totalorder %s99, %s100
      %p109 = scmp.eq.s32.totalorder %s30, 0
      %p110 = por %p108, %p109
      %p111 = scmp.ne.s32.totalorder %s99, %s100
      %p112 = scmp.eq.s32.totalorder %s31, 1
      %p113 = por %p111, %p112
      %p115 = scmp.ne.s32.totalorder %s100, %s114
      %p116 = scmp.eq.s32.totalorder %s31, 0
      %p117 = por %p115, %p116
      %s119 = sadd.s32 %s118, 1
      %p122 = scmp.eq.s32.totalorder %s25, 1
      %p123 = scmp.ne.s32.totalorder %s118, %s120
      %p124 = scmp.eq.s32.totalorder %s25, 0
      %p125 = por %p123, %p124
      %p126 = scmp.ne.s32.totalorder %s118, %s120
      %p127 = scmp.eq.s32.totalorder %s30, 1
      %p128 = por %p126, %p127
      %p129 = scmp.ne.s32.totalorder %s120, %s121
      %p130 = scmp.eq.s32.totalorder %s30, 0
      %p131 = por %p129, %p130
      %p132 = scmp.ne.s32.totalorder %s120, %s121
      %p133 = scmp.eq.s32.totalorder %s31, 1
      %p134 = por %p132, %p133
      %p136 = scmp.ne.s32.totalorder %s121, %s135
      %p137 = scmp.eq.s32.totalorder %s31, 0
      %p138 = por %p136, %p137
      %s140 = sadd.s32 %s139, 1
      %p143 = scmp.eq.s32.totalorder %s25, 1
      %p144 = scmp.ne.s32.totalorder %s139, %s141
      %p145 = scmp.eq.s32.totalorder %s25, 0
      %p146 = por %p144, %p145
      %p147 = scmp.ne.s32.totalorder %s139, %s141
      %p148 = scmp.eq.s32.totalorder %s30, 1
      %p149 = por %p147, %p148
      %p150 = scmp.ne.s32.totalorder %s141, %s142
      %p151 = scmp.eq.s32.totalorder %s30, 0
      %p152 = por %p150, %p151
      %p153 = scmp.ne.s32.totalorder %s141, %s142
      %p154 = scmp.eq.s32.totalorder %s31, 1
      %p155 = por %p153, %p154
      %p157 = scmp.ne.s32.totalorder %s142, %s156
      %p158 = scmp.eq.s32.totalorder %s31, 0
      %p159 = por %p157, %p158
      %s160 = ssub.s32 %s32, %s44
      %s161 = ssub.s32 %s33, %s40
      %s162 = sor.u32 %s160, %s161
      %p163 = scmp.eq.s32.totalorder %s162, 0
      %s165 = sadd.s32 %s164, 1
      %s166 = scalar_select %p163, %s164, %s165
      %p169 = pneg %p163
      %p170 = scmp.eq.s32.totalorder %s25, 1
      %p171 = por %p169, %p170
      %p172 = scmp.ne.s32.totalorder %s164, %s167
      %p173 = scmp.eq.s32.totalorder %s25, 0
      %p174 = por %p172, %p173
      %p175 = scmp.ne.s32.totalorder %s164, %s167
      %p176 = scmp.eq.s32.totalorder %s30, 1
      %p177 = por %p175, %p176
      %p178 = scmp.ne.s32.totalorder %s167, %s168
      %p179 = scmp.eq.s32.totalorder %s30, 0
      %p180 = por %p178, %p179
      %p181 = scmp.ne.s32.totalorder %s167, %s168
      %p182 = scmp.eq.s32.totalorder %s31, 1
      %p183 = por %p181, %p182
      %p185 = scmp.ne.s32.totalorder %s168, %s184
      %p186 = scmp.eq.s32.totalorder %s31, 0
      %p187 = por %p185, %p186
      %s188 = ssub.s32 %s32, %s44
      %s189 = ssub.s32 %s33, %s40
      %s190 = sor.u32 %s188, %s189
      %p191 = scmp.eq.s32.totalorder %s190, 0
      %s193 = sadd.s32 %s192, 1
      %s194 = scalar_select %p191, %s192, %s193
      %p197 = pneg %p191
      %p198 = scmp.eq.s32.totalorder %s25, 1
      %p199 = por %p197, %p198
      %p200 = scmp.ne.s32.totalorder %s192, %s195
      %p201 = scmp.eq.s32.totalorder %s25, 0
      %p202 = por %p200, %p201
      %p203 = scmp.ne.s32.totalorder %s192, %s195
      %p204 = scmp.eq.s32.totalorder %s30, 1
      %p205 = por %p203, %p204
      %p206 = scmp.ne.s32.totalorder %s195, %s196
      %p207 = scmp.eq.s32.totalorder %s30, 0
      %p208 = por %p206, %p207
      %p209 = scmp.ne.s32.totalorder %s195, %s196
      %p210 = scmp.eq.s32.totalorder %s31, 1
      %p211 = por %p209, %p210
      %p213 = scmp.ne.s32.totalorder %s196, %s212
      %p214 = scmp.eq.s32.totalorder %s31, 0
      %p215 = por %p213, %p214
      %s216 = ssub.s32 %s32, %s44
      %s217 = ssub.s32 %s33, %s40
      %s218 = sor.u32 %s216, %s217
      %p219 = scmp.eq.s32.totalorder %s218, 0
      %s221 = sadd.s32 %s220, 1
      %s222 = scalar_select %p219, %s220, %s221
      %p225 = pneg %p219
      %p226 = scmp.eq.s32.totalorder %s25, 1
      %p227 = por %p225, %p226
      %p228 = scmp.ne.s32.totalorder %s220, %s223
      %p229 = scmp.eq.s32.totalorder %s25, 0
      %p230 = por %p228, %p229
      %p231 = scmp.ne.s32.totalorder %s220, %s223
      %p232 = scmp.eq.s32.totalorder %s30, 1
      %p233 = por %p231, %p232
      %p234 = scmp.ne.s32.totalorder %s223, %s224
      %p235 = scmp.eq.s32.totalorder %s30, 0
      %p236 = por %p234, %p235
      %p237 = scmp.ne.s32.totalorder %s223, %s224
      %p238 = scmp.eq.s32.totalorder %s31, 1
      %p239 = por %p237, %p238
      %p241 = scmp.ne.s32.totalorder %s224, %s240
      %p242 = scmp.eq.s32.totalorder %s31, 0
      %p243 = por %p241, %p242
      %p244 = scmp.le.s32.totalorder 1, %s25
      %p245 = scmp.lt.s32.totalorder %s25, 3
      %p246 = pnand %p244, %p245
      %p247 = pneg %p246
      // Predicated region
      $region9: #{residual_block_v2.4} parent=5 // pred_check
        _
      $region10: #{residual_block_v2.4} parent=5 // pred_check_branch
        %249 = sbr.rel (%p246) target = $region12
      $region11: #{residual_block_v2.4} parent=5 // pred_region
        %s250 = ssub.s32 %s25, 1
        // Predicated region
        $region13: #{residual_block_v2.4} parent=11 // pred_check
          %p251 = pneg %p89
        $region14: #{residual_block_v2.4} parent=11 // pred_check_branch
          %253 = sbr.rel (%p251) target = $region16
        $region15: #{residual_block_v2.4} parent=11 // pred_region
          %s255 = ssub.s32 64, 64
          %256 = vsyncadd [#allocation7], %s255
          %s257 = smul.addr %s35, 64
          %s258 = scalar_lea.hbm %s1, %s257
          %s260 = sshll.u32 [#allocation6], 4
          %s261 = int_to_ptr.vmem [resolvable:$true] %s260
          %263 = dma.hbm_to_vmem [thread:$0]  %s258, 64, %s261, [#allocation7]
        $region16: #{residual_block_v2.4} parent=11 // pred_fallthru
          _
        // Predicated region
        $region17: #{residual_block_v2.4} parent=11 // pred_check
          %p264 = pneg %p110
        $region18: #{residual_block_v2.4} parent=11 // pred_check_branch
          %266 = sbr.rel (%p264) target = $region20
        $region19: #{residual_block_v2.4} parent=11 // pred_region
          %s268 = ssub.s32 128, 128
          %269 = vsyncadd [#allocation7], %s268
          %s271 = sshll.u32 [#allocation8], 4
          %s272 = int_to_ptr.vmem [resolvable:$true] %s271
          %274 = dma.hbm_to_vmem [thread:$0]  %s2, 128, %s272, [#allocation7]
        $region20: #{residual_block_v2.4} parent=11 // pred_fallthru
          _
        // Predicated region
        $region21: #{residual_block_v2.4} parent=11 // pred_check
          %p275 = pneg %p131
        $region22: #{residual_block_v2.4} parent=11 // pred_check_branch
          %277 = sbr.rel (%p275) target = $region24
        $region23: #{residual_block_v2.4} parent=11 // pred_region
          %s279 = ssub.s32 128, 128
          %280 = vsyncadd [#allocation10], %s279
          %s282 = sshll.u32 [#allocation9], 4
          %s283 = int_to_ptr.vmem [resolvable:$true] %s282
          %285 = dma.hbm_to_vmem [thread:$0]  %s3, 128, %s283, [#allocation10]
        $region24: #{residual_block_v2.4} parent=11 // pred_fallthru
          _
        // Predicated region
        $region25: #{residual_block_v2.4} parent=11 // pred_check
          %p286 = pneg %p152
        $region26: #{residual_block_v2.4} parent=11 // pred_check_branch
          %288 = sbr.rel (%p286) target = $region28
        $region27: #{residual_block_v2.4} parent=11 // pred_region
          %s290 = ssub.s32 48, 48
          %291 = vsyncadd [#allocation10], %s290
          %s293 = sshll.u32 [#allocation11], 4
          %s294 = int_to_ptr.vmem [resolvable:$true] %s293
          %296 = dma.hbm_to_vmem [thread:$0]  %s4, 48, %s294, [#allocation10]
        $region28: #{residual_block_v2.4} parent=11 // pred_fallthru
          _
      $region12: #{residual_block_v2.4} parent=5 // pred_fallthru
        _
      %p297 = scmp.lt.s32.totalorder %s25, 2
      // Predicated region
      $region29: #{residual_block_v2.4} parent=5 // pred_check
        %p298 = pneg %p297
      $region30: #{residual_block_v2.4} parent=5 // pred_check_branch
        %300 = sbr.rel (%p298) target = $region32
      $region31: #{residual_block_v2.4} parent=5 // pred_region
        // Predicated region
        $region33: #{residual_block_v2.4} parent=31 // pred_check
          %p301 = pneg %p57
        $region34: #{residual_block_v2.4} parent=31 // pred_check_branch
          %303 = sbr.rel (%p301) target = $region36
        $region35: #{residual_block_v2.4} parent=31 // pred_region
          %s304 = sand.u32 %s47, 1
          %s305 = scalar_lea.sflag [#allocation4], %s304
          %s306 = sand.u32 %s47, 1
          %s307 = smul.addr %s306, 12
          %s308 = scalar_lea.vmem [#allocation3], %s307
          %s310 = ssub.s32 192, 192
          %311 = vsyncadd %s305, %s310
          %s312 = smul.addr %s32, 3
          %s313 = smul.addr %s312, 64
          %s314 = scalar_lea.hbm %s0, %s313
          %s316 = sshll.u32 %s308, 4
          %s317 = int_to_ptr.vmem [resolvable:$true] %s316
          %319 = dma.hbm_to_vmem [thread:$0]  %s314, 192, %s317, %s305
        $region36: #{residual_block_v2.4} parent=31 // pred_fallthru
          _
      $region32: #{residual_block_v2.4} parent=5 // pred_fallthru
        _
      %p320 = scmp.le.s32.totalorder 1, %s25
      %p321 = scmp.lt.s32.totalorder %s25, 3
      %p322 = pnand %p320, %p321
      %p323 = pneg %p322
      // Predicated region
      $region37: #{residual_block_v2.4} parent=5 // pred_check
        _
      $region38: #{residual_block_v2.4} parent=5 // pred_check_branch
        %325 = sbr.rel (%p322) target = $region40
      $region39: #{residual_block_v2.4} parent=5 // pred_region
        %s326 = ssub.s32 %s25, 1
        %s327 = sand.u32 %s50, 1
        %s328 = scalar_lea.sflag [#allocation4], %s327
        %s329 = sand.u32 %s50, 1
        %s330 = smul.addr %s329, 12
        %s331 = scalar_lea.vmem [#allocation3], %s330
        // Predicated region
        $region41: #{residual_block_v2.4} parent=39 // pred_check
          %p332 = pneg %p63
        $region42: #{residual_block_v2.4} parent=39 // pred_check_branch
          %334 = sbr.rel (%p332) target = $region44
        $region43: #{residual_block_v2.4} parent=39 // pred_region
          %335 = dma.done %s328, 192
        $region44: #{residual_block_v2.4} parent=39 // pred_fallthru
          _
        // Predicated region
        $region45: #{residual_block_v2.4} parent=39 // pred_check
          %p336 = pneg %p89
        $region46: #{residual_block_v2.4} parent=39 // pred_check_branch
          %338 = sbr.rel (%p336) target = $region48
        $region47: #{residual_block_v2.4} parent=39 // pred_region
          %339 = dma.done [#allocation7], 64
        $region48: #{residual_block_v2.4} parent=39 // pred_fallthru
          _
        // Predicated region
        $region49: #{residual_block_v2.4} parent=39 // pred_check
          %p340 = pneg %p110
        $region50: #{residual_block_v2.4} parent=39 // pred_check_branch
          %342 = sbr.rel (%p340) target = $region52
        $region51: #{residual_block_v2.4} parent=39 // pred_region
          %343 = dma.done [#allocation7], 128
        $region52: #{residual_block_v2.4} parent=39 // pred_fallthru
          _
        // Predicated region
        $region53: #{residual_block_v2.4} parent=39 // pred_check
          %p344 = pneg %p131
        $region54: #{residual_block_v2.4} parent=39 // pred_check_branch
          %346 = sbr.rel (%p344) target = $region56
        $region55: #{residual_block_v2.4} parent=39 // pred_region
          %347 = dma.done [#allocation10], 128
        $region56: #{residual_block_v2.4} parent=39 // pred_fallthru
          _
        // Predicated region
        $region57: #{residual_block_v2.4} parent=39 // pred_check
          %p348 = pneg %p152
        $region58: #{residual_block_v2.4} parent=39 // pred_check_branch
          %350 = sbr.rel (%p348) target = $region60
        $region59: #{residual_block_v2.4} parent=39 // pred_region
          %351 = dma.done [#allocation10], 48
        $region60: #{residual_block_v2.4} parent=39 // pred_fallthru
          _
        %s352 = sand.u32 %s50, 1
        %s353 = scalar_lea.sflag [#allocation4], %s352
        %s354 = sand.u32 %s50, 1
        %s355 = smul.addr %s354, 12
        %s356 = scalar_lea.vmem [#allocation3], %s355
        %p357 = pneg %p63
        %p358 = pneg %p60
        %p359 = pneg %p89
        %p360 = pneg %p86
        %p361 = pneg %p110
        %p362 = pneg %p107
        %p363 = pneg %p131
        %p364 = pneg %p128
        %p365 = pneg %p152
        %p366 = pneg %p149
        %p367 = pneg %p180
        %p368 = pneg %p177
        %s369 = sand.u32 %s167, 1
        %s370 = scalar_lea.sflag [#allocation5], %s369
        %s371 = sand.u32 %s167, 1
        %s372 = smul.addr %s371, 12
        %s373 = scalar_lea.vmem [#allocation12], %s372
        %p374 = pneg %p208
        %p375 = pneg %p205
        %s376 = sand.u32 %s30, 1
        %s377 = scalar_lea.sflag [#allocation14], %s376
        %s378 = sand.u32 %s195, 1
        %s379 = smul.addr %s378, 8
        %s380 = scalar_lea.vmem [#allocation13], %s379
        %p381 = pneg %p236
        %p382 = pneg %p233
        %s383 = sand.u32 %s30, 1
        %s384 = scalar_lea.sflag [#allocation14], %s383
        %s385 = sand.u32 %s223, 1
        %s386 = smul.addr %s385, 8
        %s387 = scalar_lea.vmem [#allocation15], %s386
        %v389 = vld [vmem:[#allocation11] sm:$0x7]
        %v390 = vld [vmem:[%s331] sm:$0xff]
        %v391 = vld [vmem:[%s331 + $0x8] sm:$0xf]
        %v392 = vunpack.c.l.bf16 %v390
        %v393 = vunpack.c.h.bf16 %v390
        %v394 = vunpack.c.l.bf16 %v391
        %v395 = vld [vmem:[#allocation8] sm:$0xff]
        %397 = vset.pattern.permute.xlu0 0
        %398 = vperm.xlu0 %397, %v395
        %v399 = vpop.permute.xlu0 %398
        %v401 = vmul.f32 %v392, %v399
        %v402 = vmul.f32 %v393, %v399
        %v403 = vmul.f32 %v394, %v399
        %v404 = vld [vmem:[#allocation9] sm:$0xff]
        %406 = vset.pattern.permute.xlu0 0
        %407 = vperm.xlu0 %406, %v404
        %v408 = vpop.permute.xlu0 %407
        %v410 = vadd.f32 %v401, %v408
        %v411 = vadd.f32 %v402, %v408
        %v412 = vadd.f32 %v403, %v408
        %v413 = vmax.f32 %v410, 0.0
        %v414 = vmax.f32 %v411, 0.0
        %v415 = vmax.f32 %v412, 0.0
        %v417 = vlaneseq
        %v418 = vshrl.u32 %v417, 7
        %v419 = vsub.s32 0, %v418
        %v420 = vrot.slane %v389, %v419
        %v421 = vlaneseq
        %v422 = vshrl.u32 %v421, 7
        %v423 = vsub.s32 1, %v422
        %v424 = vrot.slane %v389, %v423
        %v425 = vlaneseq
        %v426 = vshrl.u32 %v425, 7
        %v427 = vsub.s32 2, %v426
        %v428 = vrot.slane %v389, %v427
        %v432 = vmul.f32 %v413, %v420
        %v433 = vmul.f32 %v414, %v424
        %v434 = vmul.f32 %v415, %v428
        %435 = vst [vmem:[#allocation2] sm:$0xff] 0.0
        %vm436 = vcmask 154624
        %437 = vst.msk [vmem:[#allocation2 + $0x20] sm:$0xff] %vm436, 0.0
        %438 = vst [vmem:[#allocation2 + $0x8] sm:$0xff] %v432
        %439 = vst [vmem:[#allocation2 + $0x10] sm:$0xff] %v433
        %440 = vst [vmem:[#allocation2 + $0x18] sm:$0xff] %v434
        %v441 = vld [vmem:[#allocation2] sm:$0xff]
        %v442 = vld [vmem:[#allocation2 + $0x8] sm:$0xff]
        %v443 = vld [vmem:[#allocation2 + $0x10] sm:$0xff]
        %v444 = vld [vmem:[#allocation2 + $0x18] sm:$0xff]
        %v445 = vld [vmem:[#allocation2 + $0x20] sm:$0xff]
        %v446 = vld [vmem:[#allocation6] sm:$0xf]
        %451 = vrot.lane.b32.xlu0 %v441, 127
        %v452 = vpop.permute.xlu0 %451
        %453 = vrot.lane.b32.xlu0 %v442, 127
        %v454 = vpop.permute.xlu0 %453
        %455 = vrot.lane.b32.xlu0 %v443, 127
        %v456 = vpop.permute.xlu0 %455
        %457 = vrot.lane.b32.xlu0 %v444, 127
        %v458 = vpop.permute.xlu0 %457
        %vm459 = vcmask 1039360
        %v460 = vsel %vm459, %v452, %v454
        %v461 = vsel %vm459, %v454, %v456
        %v462 = vsel %vm459, %v456, %v458
        %467 = vrot.lane.b32.xlu0 %v441, 126
        %v468 = vpop.permute.xlu0 %467
        %469 = vrot.lane.b32.xlu0 %v442, 126
        %v470 = vpop.permute.xlu0 %469
        %471 = vrot.lane.b32.xlu0 %v443, 126
        %v472 = vpop.permute.xlu0 %471
        %473 = vrot.lane.b32.xlu0 %v444, 126
        %v474 = vpop.permute.xlu0 %473
        %vm475 = vcmask 1031168
        %v476 = vsel %vm475, %v468, %v470
        %v477 = vsel %vm475, %v470, %v472
        %v478 = vsel %vm475, %v472, %v474
        %483 = vrot.lane.b32.xlu0 %v441, 110
        %v484 = vpop.permute.xlu0 %483
        %485 = vrot.lane.b32.xlu0 %v442, 110
        %v486 = vpop.permute.xlu0 %485
        %487 = vrot.lane.b32.xlu0 %v443, 110
        %v488 = vpop.permute.xlu0 %487
        %489 = vrot.lane.b32.xlu0 %v444, 110
        %v490 = vpop.permute.xlu0 %489
        %vm491 = vcmask 900096
        %v492 = vsel %vm491, %v484, %v486
        %v493 = vsel %vm491, %v486, %v488
        %v494 = vsel %vm491, %v488, %v490
        %499 = vrot.lane.b32.xlu0 %v442, 109
        %v500 = vpop.permute.xlu0 %499
        %501 = vrot.lane.b32.xlu0 %v443, 109
        %v502 = vpop.permute.xlu0 %501
        %503 = vrot.lane.b32.xlu0 %v444, 109
        %v504 = vpop.permute.xlu0 %503
        %vm505 = vcmask 891904
        %v506 = vsel %vm505, %v500, %v502
        %v507 = vsel %vm505, %v502, %v504
        %513 = vrot.lane.b32.xlu0 %v442, 108
        %v514 = vpop.permute.xlu0 %513
        %515 = vrot.lane.b32.xlu0 %v443, 108
        %v516 = vpop.permute.xlu0 %515
        %517 = vrot.lane.b32.xlu0 %v444, 108
        %v518 = vpop.permute.xlu0 %517
        %519 = vrot.lane.b32.xlu0 %v445, 108
        %v520 = vpop.permute.xlu0 %519
        %vm521 = vcmask 883712
        %v522 = vsel %vm521, %v514, %v516
        %v523 = vsel %vm521, %v516, %v518
        %v524 = vsel %vm521, %v518, %v520
        %529 = vrot.lane.b32.xlu0 %v442, 92
        %v530 = vpop.permute.xlu0 %529
        %531 = vrot.lane.b32.xlu0 %v443, 92
        %v532 = vpop.permute.xlu0 %531
        %533 = vrot.lane.b32.xlu0 %v444, 92
        %v534 = vpop.permute.xlu0 %533
        %535 = vrot.lane.b32.xlu0 %v445, 92
        %v536 = vpop.permute.xlu0 %535
        %vm537 = vcmask 752640
        %v538 = vsel %vm537, %v530, %v532
        %v539 = vsel %vm537, %v532, %v534
        %v540 = vsel %vm537, %v534, %v536
        %545 = vrot.lane.b32.xlu0 %v442, 91
        %v546 = vpop.permute.xlu0 %545
        %547 = vrot.lane.b32.xlu0 %v443, 91
        %v548 = vpop.permute.xlu0 %547
        %549 = vrot.lane.b32.xlu0 %v444, 91
        %v550 = vpop.permute.xlu0 %549
        %551 = vrot.lane.b32.xlu0 %v445, 91
        %v552 = vpop.permute.xlu0 %551
        %vm553 = vcmask 744448
        %v554 = vsel %vm553, %v546, %v548
        %v555 = vsel %vm553, %v548, %v550
        %v556 = vsel %vm553, %v550, %v552
        %561 = vrot.lane.b32.xlu0 %v442, 90
        %v562 = vpop.permute.xlu0 %561
        %563 = vrot.lane.b32.xlu0 %v443, 90
        %v564 = vpop.permute.xlu0 %563
        %565 = vrot.lane.b32.xlu0 %v444, 90
        %v566 = vpop.permute.xlu0 %565
        %567 = vrot.lane.b32.xlu0 %v445, 90
        %v568 = vpop.permute.xlu0 %567
        %vm569 = vcmask 736256
        %v570 = vsel %vm569, %v562, %v564
        %v571 = vsel %vm569, %v564, %v566
        %v572 = vsel %vm569, %v566, %v568
        %v577 = vpack.c.bf16 %v460, %v441
        %v578 = vpack.c.bf16 %v461, %v442
        %v579 = vpack.c.bf16 %v462, %v443
        %v580 = vpack.c.bf16 %v458, %v444
        %v581 = vpack.c.bf16 %v492, %v476
        %v582 = vpack.c.bf16 %v493, %v477
        %v583 = vpack.c.bf16 %v494, %v478
        %v584 = vpack.c.bf16 %v490, %v474
        %v585 = vpack.c.bf16 %v514, %v500
        %v586 = vpack.c.bf16 %v522, %v506
        %v587 = vpack.c.bf16 %v523, %v507
        %v588 = vpack.c.bf16 %v524, %v504
        %v589 = vpack.c.bf16 %v546, %v530
        %v590 = vpack.c.bf16 %v554, %v538
        %v591 = vpack.c.bf16 %v555, %v539
        %v592 = vpack.c.bf16 %v556, %v540
        %v593 = vpack.c.bf16 %v562, %v562
        %v594 = vpack.c.bf16 %v570, %v570
        %v595 = vpack.c.bf16 %v571, %v571
        %v596 = vpack.c.bf16 %v572, %v572
        %617 = vrot.lane.b32.xlu0 %v577, 19
        %v618 = vpop.permute.xlu0 %617
        %619 = vrot.lane.b32.xlu0 %v578, 19
        %v620 = vpop.permute.xlu0 %619
        %621 = vrot.lane.b32.xlu0 %v579, 19
        %v622 = vpop.permute.xlu0 %621
        %623 = vrot.lane.b32.xlu0 %v580, 19
        %v624 = vpop.permute.xlu0 %623
        %625 = vrot.lane.b32.xlu0 %v581, 19
        %v626 = vpop.permute.xlu0 %625
        %627 = vrot.lane.b32.xlu0 %v582, 19
        %v628 = vpop.permute.xlu0 %627
        %629 = vrot.lane.b32.xlu0 %v583, 19
        %v630 = vpop.permute.xlu0 %629
        %631 = vrot.lane.b32.xlu0 %v584, 19
        %v632 = vpop.permute.xlu0 %631
        %633 = vrot.lane.b32.xlu0 %v585, 19
        %v634 = vpop.permute.xlu0 %633
        %635 = vrot.lane.b32.xlu0 %v586, 19
        %v636 = vpop.permute.xlu0 %635
        %637 = vrot.lane.b32.xlu0 %v587, 19
        %v638 = vpop.permute.xlu0 %637
        %639 = vrot.lane.b32.xlu0 %v588, 19
        %v640 = vpop.permute.xlu0 %639
        %641 = vrot.lane.b32.xlu0 %v589, 19
        %v642 = vpop.permute.xlu0 %641
        %643 = vrot.lane.b32.xlu0 %v590, 19
        %v644 = vpop.permute.xlu0 %643
        %645 = vrot.lane.b32.xlu0 %v591, 19
        %v646 = vpop.permute.xlu0 %645
        %647 = vrot.lane.b32.xlu0 %v592, 19
        %v648 = vpop.permute.xlu0 %647
        %649 = vrot.lane.b32.xlu0 %v593, 19
        %v650 = vpop.permute.xlu0 %649
        %651 = vrot.lane.b32.xlu0 %v594, 19
        %v652 = vpop.permute.xlu0 %651
        %653 = vrot.lane.b32.xlu0 %v595, 19
        %v654 = vpop.permute.xlu0 %653
        %655 = vrot.lane.b32.xlu0 %v596, 19
        %v656 = vpop.permute.xlu0 %655
        %vm657 = vcmask 154624
        %v658 = vsel %vm657, %v618, %v620
        %v659 = vsel %vm657, %v620, %v622
        %v660 = vsel %vm657, %v622, %v624
        %v661 = vsel %vm657, %v626, %v628
        %v662 = vsel %vm657, %v628, %v630
        %v663 = vsel %vm657, %v630, %v632
        %v664 = vsel %vm657, %v634, %v636
        %v665 = vsel %vm657, %v636, %v638
        %v666 = vsel %vm657, %v638, %v640
        %v667 = vsel %vm657, %v642, %v644
        %v668 = vsel %vm657, %v644, %v646
        %v669 = vsel %vm657, %v646, %v648
        %v670 = vsel %vm657, %v650, %v652
        %v671 = vsel %vm657, %v652, %v654
        %v672 = vsel %vm657, %v654, %v656
        %vm685 = vcmask 588800
        %v687 = vsel %vm685, %v446, 0
        %vm689 = vcmask 1043456
        %v691 = vsel %vm689, %v670, 0
        %v694 = vsel %vm689, %v671, 0
        %v697 = vsel %vm689, %v672, 0
        %699 = vmatprep.subr.bf16.mxu0 %v659
        %700 = vmatpush1.bf16.msra.mxu0 %v658
        %701 = vmatprep.subr.bf16.mxu0 %v662
        %702 = vmatpush1.bf16.msra.mxu0 %v661
        %703 = vmatprep.subr.bf16.mxu0 %v665
        %704 = vmatpush1.bf16.msra.mxu0 %v664
        %705 = vmatprep.subr.bf16.mxu0 %v668
        %706 = vmatpush1.bf16.msra.mxu0 %v667
        %707 = vmatprep.subr.bf16.mxu0 %v694
        %708 = vmatpush1.bf16.msra.mxu0 %v691
        %709 = vmatprep.subr.bf16.mxu0 0
        %710 = vmatpush1.bf16.msra.mxu0 0
        %711 = vmatprep.subr.bf16.mxu0 0
        %712 = vmatpush1.bf16.msra.mxu0 0
        %713 = vmatprep.subr.bf16.mxu0 0
        %714 = vmatpush1.bf16.msra.mxu0 0
        %715 = vmatprep.subr.bf16.mxu0 0
        %716 = vmatpush1.bf16.msra.mxu0 0
        %717 = vmatprep.subr.bf16.mxu0 0
        %718 = vmatpush1.bf16.msra.mxu0 0
        %719 = vmatprep.subr.bf16.mxu0 0
        %720 = vmatpush1.bf16.msra.mxu0 0
        %721 = vmatprep.subr.bf16.mxu0 0
        %722 = vmatpush1.bf16.msra.mxu0 0
        %723 = vmatprep.subr.bf16.mxu0 0
        %724 = vmatpush1.bf16.msra.mxu0 0
        %725 = vmatprep.subr.bf16.mxu0 0
        %726 = vmatpush1.bf16.msra.mxu0 0
        %727 = vmatprep.subr.bf16.mxu0 0
        %728 = vmatpush1.bf16.msra.mxu0 0
        %729 = vmatprep.subr.bf16.mxu0 0
        %730 = vmatpush1.bf16.msra.mxu0 0
        %731 = vmatprep.mubr.bf16.mxu0 0
        %732 = vmatmul.mubr.bf16.gmra.mrb[0].mxu0 %v687
        %v733 = vpop.f32.mrb[0].mxu0
        %v734 = vadd.f32 0.0, %v733
        %v735 = vpop.f32.mrb[0].mxu0
        %v736 = vadd.f32 0.0, %v735
        %v737 = vpop.f32.mrb[0].mxu0
        %v738 = vpop.f32.mrb[0].mxu0
        %739 = vdwg.mxu0
        %740 = vmatprep.subr.bf16.mxu0 0
        %741 = vmatpush1.bf16.msra.mxu0 %v660
        %742 = vmatprep.subr.bf16.mxu0 0
        %743 = vmatpush1.bf16.msra.mxu0 %v663
        %744 = vmatprep.subr.bf16.mxu0 0
        %745 = vmatpush1.bf16.msra.mxu0 %v666
        %746 = vmatprep.subr.bf16.mxu0 0
        %747 = vmatpush1.bf16.msra.mxu0 %v669
        %748 = vmatprep.subr.bf16.mxu0 0
        %749 = vmatpush1.bf16.msra.mxu0 %v697
        %750 = vmatprep.subr.bf16.mxu0 0
        %751 = vmatpush1.bf16.msra.mxu0 0
        %752 = vmatprep.subr.bf16.mxu0 0
        %753 = vmatpush1.bf16.msra.mxu0 0
        %754 = vmatprep.subr.bf16.mxu0 0
        %755 = vmatpush1.bf16.msra.mxu0 0
        %756 = vmatprep.subr.bf16.mxu0 0
        %757 = vmatpush1.bf16.msra.mxu0 0
        %758 = vmatprep.subr.bf16.mxu0 0
        %759 = vmatpush1.bf16.msra.mxu0 0
        %760 = vmatprep.subr.bf16.mxu0 0
        %761 = vmatpush1.bf16.msra.mxu0 0
        %762 = vmatprep.subr.bf16.mxu0 0
        %763 = vmatpush1.bf16.msra.mxu0 0
        %764 = vmatprep.subr.bf16.mxu0 0
        %765 = vmatpush1.bf16.msra.mxu0 0
        %766 = vmatprep.subr.bf16.mxu0 0
        %767 = vmatpush1.bf16.msra.mxu0 0
        %768 = vmatprep.subr.bf16.mxu0 0
        %769 = vmatpush1.bf16.msra.mxu0 0
        %770 = vmatprep.subr.bf16.mxu0 0
        %771 = vmatpush1.bf16.msra.mxu0 0
        %772 = vmatprep.mubr.bf16.mxu0 0
        %773 = vmatmul.mubr.bf16.gmra.mrb[0].mxu0 %v687
        %v774 = vpop.f32.mrb[0].mxu0
        %v775 = vadd.f32 0.0, %v774
        %v776 = vpop.f32.mrb[0].mxu0
        %v777 = vpop.f32.mrb[0].mxu0
        %v778 = vpop.f32.mrb[0].mxu0
        %779 = vdwg.mxu0
        %v780 = vmul.f32 %v734, %v420
        %v781 = vmul.f32 %v736, %v424
        %v782 = vmul.f32 %v775, %v428
        %v783 = vadd.f32 %v780, %v781
        %v784 = vadd.f32 %v783, %v782
        %785 = vadd.xlane.f32.xlu0 %v784
        %v786 = vpop.xlane.xlu0 %785
        %v787 = vmul.f32 %v786, 0.00390625
        %v788 = vsub.f32 %v734, %v787
        %v789 = vsub.f32 %v736, %v787
        %v790 = vsub.f32 %v775, %v787
        %v791 = vmul.f32 %v788, %v420
        %v792 = vmul.f32 %v789, %v424
        %v793 = vmul.f32 %v790, %v428
        %v794 = vmul.f32 %v791, %v791
        %v795 = vmul.f32 %v792, %v792
        %v796 = vmul.f32 %v793, %v793
        %v797 = vadd.f32 %v794, %v795
        %v798 = vadd.f32 %v797, %v796
        %799 = vadd.xlane.f32.xlu0 %v798
        %v800 = vpop.xlane.xlu0 %799
        %v801 = vpack.c.bf16 %v734, %v734
        %v802 = vpack.c.bf16 %v736, %v736
        %v803 = vpack.c.bf16 %v775, %v775
        %v807 = vunpack.c.l.b16 %v801
        %v808 = vunpack.c.l.b16 %v802
        %v809 = vunpack.c.l.b16 %v803
        %v810 = vpack.c.b16 %v808, %v807
        %v811 = vpack.c.b16 %v809, %v809
        %814 = vst [vmem:[%s373] sm:$0xff] %v810
        %815 = vst [vmem:[%s373 + $0x8] sm:$0xf] %v811
        %vm816 = vcmask 7168
        %817 = vst.msk [vmem:[%s380] sm:$0xff] %vm816, %v787
        %818 = vst.msk [vmem:[%s387] sm:$0xff] %vm816, %v800
        %s819 = sand.u32 %s167, 1
        %s820 = scalar_lea.sflag [#allocation5], %s819
        %s821 = sand.u32 %s167, 1
        %s822 = smul.addr %s821, 12
        %s823 = scalar_lea.vmem [#allocation12], %s822
        %s824 = sand.u32 %s30, 1
        %s825 = scalar_lea.sflag [#allocation14], %s824
        %s826 = sand.u32 %s195, 1
        %s827 = smul.addr %s826, 8
        %s828 = scalar_lea.vmem [#allocation13], %s827
        %s829 = sand.u32 %s30, 1
        %s830 = scalar_lea.sflag [#allocation14], %s829
        %s831 = sand.u32 %s223, 1
        %s832 = smul.addr %s831, 8
        %s833 = scalar_lea.vmem [#allocation15], %s832
        // Predicated region
        $region61: #{residual_block_v2.4} parent=39 // pred_check
          %p834 = pneg %p177
        $region62: #{residual_block_v2.4} parent=39 // pred_check_branch
          %836 = sbr.rel (%p834) target = $region64
        $region63: #{residual_block_v2.4} parent=39 // pred_region
          %s838 = ssub.s32 192, 192
          %839 = vsyncadd %s820, %s838
          %s840 = smul.addr %s35, 3
          %s841 = smul.addr %s34, 3
          %s842 = sadd.s32 %s840, %s841
          %s843 = smul.addr %s842, 64
          %s844 = scalar_lea.hbm %s5, %s843
          %s846 = sshll.u32 %s823, 4
          %s847 = int_to_ptr.vmem [resolvable:$true] %s846
          %849 = dma.vmem_to_hbm [thread:$0]  %s847, 192, %s844, %s820
        $region64: #{residual_block_v2.4} parent=39 // pred_fallthru
          _
        // Predicated region
        $region65: #{residual_block_v2.4} parent=39 // pred_check
          %p850 = pneg %p205
        $region66: #{residual_block_v2.4} parent=39 // pred_check_branch
          %852 = sbr.rel (%p850) target = $region68
        $region67: #{residual_block_v2.4} parent=39 // pred_region
          %s854 = ssub.s32 128, 128
          %855 = vsyncadd %s825, %s854
          %s856 = sadd.s32 %s35, %s34
          %s857 = smul.addr %s856, 128
          %s858 = scalar_lea.hbm %s6, %s857
          %s860 = sshll.u32 %s828, 4
          %s861 = int_to_ptr.vmem [resolvable:$true] %s860
          %863 = dma.vmem_to_hbm [thread:$0]  %s861, 128, %s858, %s825
        $region68: #{residual_block_v2.4} parent=39 // pred_fallthru
          _
        // Predicated region
        $region69: #{residual_block_v2.4} parent=39 // pred_check
          %p864 = pneg %p233
        $region70: #{residual_block_v2.4} parent=39 // pred_check_branch
          %866 = sbr.rel (%p864) target = $region72
        $region71: #{residual_block_v2.4} parent=39 // pred_region
          %s868 = ssub.s32 128, 128
          %869 = vsyncadd %s830, %s868
          %s870 = sadd.s32 %s35, %s34
          %s871 = smul.addr %s870, 128
          %s872 = scalar_lea.hbm %s7, %s871
          %s874 = sshll.u32 %s833, 4
          %s875 = int_to_ptr.vmem [resolvable:$true] %s874
          %877 = dma.vmem_to_hbm [thread:$0]  %s875, 128, %s872, %s830
        $region72: #{residual_block_v2.4} parent=39 // pred_fallthru
          _
      $region40: #{residual_block_v2.4} parent=5 // pred_fallthru
        _
      %p878 = scmp.le.s32.totalorder 2, %s25
      // Predicated region
      $region73: #{residual_block_v2.4} parent=5 // pred_check
        %p879 = pneg %p878
      $region74: #{residual_block_v2.4} parent=5 // pred_check_branch
        %881 = sbr.rel (%p879) target = $region76
      $region75: #{residual_block_v2.4} parent=5 // pred_region
        %s882 = ssub.s32 %s25, 2
        // Predicated region
        $region77: #{residual_block_v2.4} parent=75 // pred_check
          %p883 = pneg %p183
        $region78: #{residual_block_v2.4} parent=75 // pred_check_branch
          %885 = sbr.rel (%p883) target = $region80
        $region79: #{residual_block_v2.4} parent=75 // pred_region
          %s886 = sand.u32 %s168, 1
          %s887 = scalar_lea.sflag [#allocation5], %s886
          %s888 = sand.u32 %s168, 1
          %s889 = smul.addr %s888, 12
          %s890 = scalar_lea.vmem [#allocation12], %s889
          %891 = dma.done %s887, 192
        $region80: #{residual_block_v2.4} parent=75 // pred_fallthru
          _
        // Predicated region
        $region81: #{residual_block_v2.4} parent=75 // pred_check
          %p892 = pneg %p211
        $region82: #{residual_block_v2.4} parent=75 // pred_check_branch
          %894 = sbr.rel (%p892) target = $region84
        $region83: #{residual_block_v2.4} parent=75 // pred_region
          %s895 = sand.u32 %s31, 1
          %s896 = scalar_lea.sflag [#allocation14], %s895
          %s897 = sand.u32 %s196, 1
          %s898 = smul.addr %s897, 8
          %s899 = scalar_lea.vmem [#allocation13], %s898
          %900 = dma.done %s896, 128
        $region84: #{residual_block_v2.4} parent=75 // pred_fallthru
          _
        // Predicated region
        $region85: #{residual_block_v2.4} parent=75 // pred_check
          %p901 = pneg %p239
        $region86: #{residual_block_v2.4} parent=75 // pred_check_branch
          %903 = sbr.rel (%p901) target = $region88
        $region87: #{residual_block_v2.4} parent=75 // pred_region
          %s904 = sand.u32 %s31, 1
          %s905 = scalar_lea.sflag [#allocation14], %s904
          %s906 = sand.u32 %s224, 1
          %s907 = smul.addr %s906, 8
          %s908 = scalar_lea.vmem [#allocation15], %s907
          %909 = dma.done %s905, 128
        $region88: #{residual_block_v2.4} parent=75 // pred_fallthru
          _
      $region76: #{residual_block_v2.4} parent=5 // pred_fallthru
        _
    $region6: #{residual_block_v2.4} parent=1 // loop_footer
      %s29 = sadd.s32 1, %s25
    $region7: #{residual_block_v2.4} parent=1 // loop_footer_branch
      %24 = sbr.rel target = $region3
    $region8: #{residual_block_v2.4} parent=1 // loop_exit
      _
    %910 = vsyncpa [#allocation4], 1
    %s911 = scalar_lea.sflag [#allocation4], 1
    %912 = vsyncpa %s911, 1
    %913 = vsyncpa [#allocation7], 1
    %914 = vsyncpa [#allocation10], 1
    %915 = vsyncpa [#allocation5], 1
    %s916 = scalar_lea.sflag [#allocation5], 1
    %917 = vsyncpa %s916, 1
    %918 = vsyncpa [#allocation14], 1
    %s919 = scalar_lea.sflag [#allocation14], 1
    %920 = vsyncpa %s919, 1

</llo_original>
